<compile_context>
chip_gen: v7x
topology: tpu7x:2x2x1
jax: 0.10.0
libtpu: 0.0.40
codegen_flags: <defaults>
</compile_context>

<pallas_src>
import functools

import jax
import jax.numpy as jnp
from jax.experimental import pallas as pl
from jax.experimental.pallas import tpu as pltpu


def _attention_kernel(x_ref, wq_ref, wkv_ref, wp_ref, bp_ref, o_ref,
                      kt_ref, vh_ref, attn_ref, *,
                      num_heads: int, head_dim: int, block_q: int):
    """Grid = (batch, q_tile).

    x_ref   : (1, T, D)   full-sequence block of x for this batch (Q/K/V source)
    wq_ref  : (D, D)      Q weight, 1/sqrt(hd) folded in, compute dtype
    wkv_ref : (D, 2D)     fused [K | V] weight, compute dtype
    wp_ref  : (D, D)      output projection weight, compute dtype
    bp_ref  : (1, D)      output projection bias (f32)
    o_ref   : (1, TQ, D)
    kt_ref  : (H, hd, T)  VMEM scratch: transposed K cache (persists across q tiles)
    vh_ref  : (H, T, hd)  VMEM scratch: V cache
    attn_ref: (TQ, D)     VMEM scratch: merged-head context (lane-dense)
    """
    H, hd = num_heads, head_dim
    T = x_ref.shape[1]
    D = H * hd
    cdt = kt_ref.dtype  # MXU operand ("compute") dtype; accumulation is f32.

    # ---- K/V projections: once per batch (first q tile), cached in VMEM ----
    @pl.when(pl.program_id(1) == 0)
    def _():
        xkv = x_ref[0].astype(cdt)                                          # (T, D)
        kv = jnp.dot(xkv, wkv_ref[...], preferred_element_type=jnp.float32)  # (T, 2D)
        k = kv[:, :D]                                                        # (T, D)
        v = kv[:, D:]                                                        # (T, D)
        # K cache stored pre-transposed: 2-D transpose once per batch, then a
        # free leading-dim split (D -> H, hd).  Lane dim of the cache is T.
        kt_ref[...] = k.T.reshape(H, hd, T).astype(cdt)                      # (H, hd, T)
        vh_ref[...] = jnp.transpose(v.reshape(T, H, hd), (1, 0, 2)).astype(cdt)

    # ---- Q projection for this query tile (scale already folded into Wq) ----
    q_start = pl.multiple_of(pl.program_id(1) * block_q, block_q)
    xq = x_ref[0, pl.ds(q_start, block_q), :].astype(cdt)                    # (TQ, D)
    q = jnp.dot(xq, wq_ref[...], preferred_element_type=jnp.float32)         # (TQ, D)
    qh = jnp.transpose(q.reshape(block_q, H, hd), (1, 0, 2)).astype(cdt)     # (H, TQ, hd)

    # ---- head-batched scores against the transposed K cache (MXU-natural) ----
    s = jnp.einsum('hqd,hdk->hqk', qh, kt_ref[...],
                   preferred_element_type=jnp.float32)                       # (H, TQ, T)
    m = jnp.max(s, axis=-1, keepdims=True)
    p = jnp.exp(s - m)                                                       # unnormalized
    l = jnp.sum(p, axis=-1, keepdims=True)                                   # (H, TQ, 1)

    # ---- PV first, normalize after (H*TQ*hd multiplies instead of H*TQ*T) ----
    oh = jnp.einsum('hqk,hkd->hqd', p.astype(cdt), vh_ref[...],
                    preferred_element_type=jnp.float32)                      # (H, TQ, hd)
    inv_l = pl.reciprocal(l, approx=True)                                    # EUP, ~free

    # ---- merge heads into a lane-dense (TQ, D) buffer, then ONE full-depth ----
    # ---- (D) projection matmul: no (H, TQ, D) f32 intermediate, no head-sum --
    for h in range(H):  # static unroll; H small
        attn_ref[:, h * hd:(h + 1) * hd] = (oh[h] * inv_l[h]).astype(cdt)
    out = jnp.dot(attn_ref[...], wp_ref[...],
                  preferred_element_type=jnp.float32) + bp_ref[...]          # (TQ, D)
    o_ref[0] = out.astype(o_ref.dtype)


def _vmem_capacity_bytes() -> int:
    try:
        return int(pltpu.get_tpu_info().vmem_capacity_bytes)
    except Exception:
        return 128 * 1024 * 1024


def _choose_block_q(T: int, *, sublane: int = 8, target: int = 256) -> int:
    """Largest divisor of T that is <= target and sublane/lane friendly.

    Prefers multiples of 128, then multiples of the sublane quantum; never
    returns degenerate values (falls back to full T, which is always a legal
    block shape).
    """
    if T <= target:
        return T
    for quantum in (128, sublane):
        for cand in range(target - target % quantum, 0, -quantum):
            if cand > 0 and T % cand == 0:
                return cand
    return T


def attention_forward(x, w_qkv, w_proj, b_proj, *, num_heads: int,
                      block_q=None, compute_dtype=None):
    """fast-DiT Attention forward.  compute_dtype=jnp.bfloat16 runs all MXU
    operands (weights, K/V cache, probs) in bf16 with f32 accumulation — the
    recommended production setting on v5e/v6e/v7x."""
    N, T, D = x.shape
    assert D % num_heads == 0, "dim must be divisible by num_heads"
    hd = D // num_heads

    cdt = jnp.dtype(compute_dtype) if compute_dtype is not None else x.dtype

    vmem_cap = _vmem_capacity_bytes()
    if block_q is None:
        sublane = 16 if (cdt == jnp.bfloat16 or x.dtype == jnp.bfloat16) else 8
        # v7x (64 MiB VMEM): keep the (H, block_q, T) f32 score tile small.
        target = 128 if vmem_cap <= 64 * 1024 * 1024 else 256
        block_q = _choose_block_q(T, sublane=sublane, target=target)
    assert T % block_q == 0
    n_q = T // block_q

    # Host-side one-time weight prep: fold softmax scale into Wq, fuse Wk|Wv,
    # cast matmul operands to the compute dtype.
    scale = jnp.asarray(hd ** -0.5, dtype=jnp.float32)
    w_q = (w_qkv[:, :D].astype(jnp.float32) * scale).astype(cdt)   # (D, D)
    w_kv = w_qkv[:, D:].astype(cdt)                                # (D, 2D) fused K|V
    w_p = w_proj.astype(cdt)                                       # (D, D)
    b_p = b_proj.reshape(1, D).astype(jnp.float32)

    kernel = functools.partial(_attention_kernel, num_heads=num_heads,
                               head_dim=hd, block_q=block_q)

    cbytes = jnp.dtype(cdt).itemsize
    xbytes = x.dtype.itemsize
    cost = pl.CostEstimate(
        flops=int(8 * N * T * D * D          # Q + fused KV + output projections
                  + 4 * N * T * T * D),      # q@k^T and p@v summed over heads
        transcendentals=int(N * num_heads * T * T),
        bytes_accessed=int(2 * N * T * D * xbytes + (4 * D * D + D) * cbytes),
    )

    # Leave headroom for double buffers / compiler scratch:
    #   v7x (64 MiB physical) -> 48 MiB; v5e/v6e (128 MiB) -> 96 MiB.
    vmem_limit = min(int(vmem_cap * 3 // 4), 96 * 1024 * 1024)

    return pl.pallas_call(
        kernel,
        out_shape=jax.ShapeDtypeStruct((N, T, D), x.dtype),
        grid_spec=pltpu.PrefetchScalarGridSpec(
            num_scalar_prefetch=0,
            grid=(N, n_q),
            in_specs=[
                pl.BlockSpec((1, T, D), lambda b, qi: (b, 0, 0)),      # x (per batch)
                pl.BlockSpec((D, D), lambda b, qi: (0, 0)),            # Wq (scaled)
                pl.BlockSpec((D, 2 * D), lambda b, qi: (0, 0)),        # Wk|Wv fused
                pl.BlockSpec((D, D), lambda b, qi: (0, 0)),            # Wproj
                pl.BlockSpec((1, D), lambda b, qi: (0, 0)),            # bias
            ],
            out_specs=pl.BlockSpec((1, block_q, D), lambda b, qi: (b, qi, 0)),
            scratch_shapes=[
                pltpu.VMEM((num_heads, hd, T), cdt),   # K^T cache (lane dim = T)
                pltpu.VMEM((num_heads, T, hd), cdt),   # V cache
                pltpu.VMEM((block_q, D), cdt),         # merged-head context
            ],
        ),
        compiler_params=pltpu.CompilerParams(
            # batch: megacore-parallel; q-tile: ordered so the K/V scratch
            # filled at qi==0 is reused by later q tiles of the same batch.
            dimension_semantics=("parallel", "arbitrary"),
            vmem_limit_bytes=vmem_limit,
        ),
        cost_estimate=cost,
    )(x, w_q, w_kv, w_p, b_p)


def attention_reference(x, w_qkv, w_proj, b_proj, *, num_heads: int):
    """Pure-JAX reference matching the PyTorch forward semantics."""
    N, T, D = x.shape
    hd = D // num_heads
    qkv = x @ w_qkv                                          # (N, T, 3D)
    qkv = qkv.reshape(N, T, 3, num_heads, hd).transpose(2, 0, 3, 1, 4)
    q, k, v = qkv[0], qkv[1], qkv[2]                         # (N, H, T, hd)
    s = (q * (hd ** -0.5)) @ jnp.swapaxes(k, -2, -1)         # (N, H, T, T)
    p = jax.nn.softmax(s, axis=-1)
    o = p @ v                                                # (N, H, T, hd)
    o = jnp.swapaxes(o, 1, 2).reshape(N, T, D)
    return o @ w_proj + b_proj.reshape(1, D)


if __name__ == "__main__":
    N, T, D = 2, 8, 32
    num_heads = 4

    key = jax.random.PRNGKey(0)
    kx, kqkv, kp, kb = jax.random.split(key, 4)

    x = jax.random.normal(kx, (N, T, D), dtype=jnp.float32)
    # nn.Linear(dim, dim*3, bias=False) -> torch weight (3D, D); stored as (D, 3D)
    w_qkv = jax.random.normal(kqkv, (D, 3 * D), dtype=jnp.float32) * 0.05
    # nn.Linear(dim, dim) -> stored as (D, D) (+ bias)
    w_proj = jax.random.normal(kp, (D, D), dtype=jnp.float32) * 0.05
    b_proj = jax.random.normal(kb, (1, D), dtype=jnp.float32) * 0.05

    ref = attention_reference(x, w_qkv, w_proj, b_proj, num_heads=num_heads)

    # f32 operands (matches the reference closely; approx reciprocal ~1e-3 rel).
    out = attention_forward(x, w_qkv, w_proj, b_proj, num_heads=num_heads)
    out = jax.block_until_ready(out)
    assert out.shape == (N, T, D)
    assert jnp.allclose(out, ref, atol=5e-3, rtol=5e-3), "f32 mismatch vs reference"

    # bf16 MXU-operand path (production config on v5e/v6e/v7x): f32 accumulation,
    # looser tolerance due to bf16 operand rounding.
    out_bf16 = attention_forward(x, w_qkv, w_proj, b_proj, num_heads=num_heads,
                                 compute_dtype=jnp.bfloat16)
    out_bf16 = jax.block_until_ready(out_bf16)
    assert jnp.allclose(out_bf16, ref, atol=5e-2, rtol=5e-2), "bf16 mismatch vs reference"

    print("KERNEL_OK")
</pallas_src>

<mosaic_0001>
module attributes {stable_mosaic.version = 11 : i64} {
  func.func @_attention_kernel(%arg0: i32, %arg1: i32, %arg2: memref<1x8x32xf32, #tpu.memory_space<vmem>>, %arg3: memref<32x32xf32, #tpu.memory_space<vmem>>, %arg4: memref<32x64xf32, #tpu.memory_space<vmem>>, %arg5: memref<32x32xf32, #tpu.memory_space<vmem>>, %arg6: memref<1x32xf32, #tpu.memory_space<vmem>>, %arg7: memref<1x8x32xf32, #tpu.memory_space<vmem>>, %arg8: memref<4x8x8xf32, #tpu.memory_space<vmem>>, %arg9: memref<4x8x8xf32, #tpu.memory_space<vmem>>, %arg10: memref<8x32xf32, #tpu.memory_space<vmem>>) attributes {dimension_semantics = [#tpu.dimension_semantics<parallel>, #tpu.dimension_semantics<arbitrary>], iteration_bounds = array<i64: 2, 1>, scalar_prefetch = 0 : i64, scratch_operands = 3 : i64, tpu.core_type = #tpu.core_type<tc>, window_params = [{transform_indices = @transform_0, window_bounds = array<i64: 1, 8, 32>}, {pipeline_mode = #tpu.pipeline_mode<synchronous>, transform_indices = @transform_1, window_bounds = array<i64: 32, 32>}, {pipeline_mode = #tpu.pipeline_mode<synchronous>, transform_indices = @transform_2, window_bounds = array<i64: 32, 64>}, {pipeline_mode = #tpu.pipeline_mode<synchronous>, transform_indices = @transform_3, window_bounds = array<i64: 32, 32>}, {pipeline_mode = #tpu.pipeline_mode<synchronous>, transform_indices = @transform_4, window_bounds = array<i64: 1, 32>}, {transform_indices = @transform_5, window_bounds = array<i64: 1, 8, 32>}]} {
    %c0_i32 = arith.constant 0 : i32
    %0 = arith.cmpi eq, %arg1, %c0_i32 : i32
    %1 = arith.extui %0 : i1 to i32
    %c0_i32_0 = arith.constant 0 : i32
    %2 = arith.cmpi ne, %1, %c0_i32_0 : i32
    scf.if %2 {
      %c0_29 = arith.constant 0 : index
      %c0_30 = arith.constant 0 : index
      %c0_31 = arith.constant 0 : index
      %61 = vector.load %arg2[%c0_29, %c0_30, %c0_31] : memref<1x8x32xf32, #tpu.memory_space<vmem>>, vector<1x8x32xf32>
      %62 = vector.shape_cast %61 : vector<1x8x32xf32> to vector<8x32xf32>
      %c0_32 = arith.constant 0 : index
      %c0_33 = arith.constant 0 : index
      %63 = vector.load %arg4[%c0_32, %c0_33] : memref<32x64xf32, #tpu.memory_space<vmem>>, vector<32x64xf32>
      %cst_34 = arith.constant dense<0.000000e+00> : vector<8x64xf32>
      %64 = tpu.matmul %62, %63, %cst_34 {dimension_numbers = #tpu.dot_dimension_numbers<[1], [0], [0], [1], [0, 0, 1, 1], [], []>} : vector<8x32xf32>, vector<32x64xf32>, vector<8x64xf32> -> vector<8x64xf32>
      %65 = vector.extract_strided_slice %64 {offsets = [0, 0], sizes = [8, 32], strides = [1, 1]} : vector<8x64xf32> to vector<8x32xf32>
      %66 = vector.extract_strided_slice %64 {offsets = [0, 32], sizes = [8, 32], strides = [1, 1]} : vector<8x64xf32> to vector<8x32xf32>
      %67 = tpu.transpose %65, [1, 0] : vector<8x32xf32> -> vector<32x8xf32>
      %68 = vector.shape_cast %67 : vector<32x8xf32> to vector<4x8x8xf32>
      %c0_35 = arith.constant 0 : index
      %c0_36 = arith.constant 0 : index
      %c0_37 = arith.constant 0 : index
      %69 = vector.load %arg8[%c0_35, %c0_36, %c0_37] : memref<4x8x8xf32, #tpu.memory_space<vmem>>, vector<4x8x8xf32>
      tpu.vector_store %arg8[%c0_35, %c0_36, %c0_37], %68 {strides = array<i32>} : memref<4x8x8xf32, #tpu.memory_space<vmem>>, vector<4x8x8xf32>,
      %70 = vector.shape_cast %66 : vector<8x32xf32> to vector<8x4x8xf32>
      %71 = tpu.transpose %70, [1, 0, 2] : vector<8x4x8xf32> -> vector<4x8x8xf32>
      %c0_38 = arith.constant 0 : index
      %c0_39 = arith.constant 0 : index
      %c0_40 = arith.constant 0 : index
      %72 = vector.load %arg9[%c0_38, %c0_39, %c0_40] : memref<4x8x8xf32, #tpu.memory_space<vmem>>, vector<4x8x8xf32>
      tpu.vector_store %arg9[%c0_38, %c0_39, %c0_40], %71 {strides = array<i32>} : memref<4x8x8xf32, #tpu.memory_space<vmem>>, vector<4x8x8xf32>,
    } else {
    }
    %c8_i32 = arith.constant 8 : i32
    %3 = arith.muli %arg1, %c8_i32 : i32
    %4 = tpu.assume_multiple %3, 8 : i32
    %c0 = arith.constant 0 : index
    %5 = arith.index_cast %4 : i32 to index
    %c0_1 = arith.constant 0 : index
    %6 = vector.load %arg2[%c0, %5, %c0_1] : memref<1x8x32xf32, #tpu.memory_space<vmem>>, vector<1x8x32xf32>
    %7 = vector.shape_cast %6 : vector<1x8x32xf32> to vector<8x32xf32>
    %c0_2 = arith.constant 0 : index
    %c0_3 = arith.constant 0 : index
    %8 = vector.load %arg3[%c0_2, %c0_3] : memref<32x32xf32, #tpu.memory_space<vmem>>, vector<32x32xf32>
    %cst = arith.constant dense<0.000000e+00> : vector<8x32xf32>
    %9 = tpu.matmul %7, %8, %cst {dimension_numbers = #tpu.dot_dimension_numbers<[1], [0], [0], [1], [0, 0, 1, 1], [], []>} : vector<8x32xf32>, vector<32x32xf32>, vector<8x32xf32> -> vector<8x32xf32>
    %10 = vector.shape_cast %9 : vector<8x32xf32> to vector<8x4x8xf32>
    %11 = tpu.transpose %10, [1, 0, 2] : vector<8x4x8xf32> -> vector<4x8x8xf32>
    %c0_4 = arith.constant 0 : index
    %c0_5 = arith.constant 0 : index
    %c0_6 = arith.constant 0 : index
    %12 = vector.load %arg8[%c0_4, %c0_5, %c0_6] : memref<4x8x8xf32, #tpu.memory_space<vmem>>, vector<4x8x8xf32>
    "tpu.trace_start"() <{level = 10 : i32, message = "hqd,hdk->hqk"}> : () -> ()
    %cst_7 = arith.constant dense<0.000000e+00> : vector<4x8x8xf32>
    %13 = tpu.matmul %11, %12, %cst_7 {dimension_numbers = #tpu.dot_dimension_numbers<[2], [1], [1], [2], [0, 0, 0, 1, 1, 2], [0], [0]>} : vector<4x8x8xf32>, vector<4x8x8xf32>, vector<4x8x8xf32> -> vector<4x8x8xf32>
    "tpu.trace_stop"() : () -> ()
    %cst_8 = arith.constant dense<0xFF800000> : vector<4x8xf32>
    %14 = vector.multi_reduction <maximumf>, %13, %cst_8 [2] : vector<4x8x8xf32> to vector<4x8xf32>
    %15 = vector.shape_cast %14 : vector<4x8xf32> to vector<4x8x1xf32>
    %16 = vector.broadcast %15 : vector<4x8x1xf32> to vector<4x8x8xf32>
    %17 = arith.subf %13, %16 : vector<4x8x8xf32>
    %18 = math.exp %17 : vector<4x8x8xf32>
    %cst_9 = arith.constant dense<0.000000e+00> : vector<4x8xf32>
    %19 = vector.multi_reduction <add>, %18, %cst_9 [2] : vector<4x8x8xf32> to vector<4x8xf32>
    %20 = vector.shape_cast %19 : vector<4x8xf32> to vector<4x8x1xf32>
    %c0_10 = arith.constant 0 : index
    %c0_11 = arith.constant 0 : index
    %c0_12 = arith.constant 0 : index
    %21 = vector.load %arg9[%c0_10, %c0_11, %c0_12] : memref<4x8x8xf32, #tpu.memory_space<vmem>>, vector<4x8x8xf32>
    "tpu.trace_start"() <{level = 10 : i32, message = "hqk,hkd->hqd"}> : () -> ()
    %cst_13 = arith.constant dense<0.000000e+00> : vector<4x8x8xf32>
    %22 = tpu.matmul %18, %21, %cst_13 {dimension_numbers = #tpu.dot_dimension_numbers<[2], [1], [1], [2], [0, 0, 0, 1, 1, 2], [0], [0]>} : vector<4x8x8xf32>, vector<4x8x8xf32>, vector<4x8x8xf32> -> vector<4x8x8xf32>
    "tpu.trace_stop"() : () -> ()
    %23 = tpu.reciprocal %20 {approx = true} : vector<4x8x1xf32> -> vector<4x8x1xf32>
    %24 = vector.extract_strided_slice %22 {offsets = [0, 0, 0], sizes = [1, 8, 8], strides = [1, 1, 1]} : vector<4x8x8xf32> to vector<1x8x8xf32>
    %25 = vector.shape_cast %24 : vector<1x8x8xf32> to vector<8x8xf32>
    %26 = vector.extract_strided_slice %23 {offsets = [0, 0, 0], sizes = [1, 8, 1], strides = [1, 1, 1]} : vector<4x8x1xf32> to vector<1x8x1xf32>
    %27 = vector.shape_cast %26 : vector<1x8x1xf32> to vector<8x1xf32>
    %28 = vector.broadcast %27 : vector<8x1xf32> to vector<8x8xf32>
    %29 = arith.mulf %25, %28 : vector<8x8xf32>
    %c0_14 = arith.constant 0 : index
    %c0_15 = arith.constant 0 : index
    %30 = vector.load %arg10[%c0_14, %c0_15] : memref<8x32xf32, #tpu.memory_space<vmem>>, vector<8x8xf32>
    tpu.vector_store %arg10[%c0_14, %c0_15], %29 {strides = array<i32>} : memref<8x32xf32, #tpu.memory_space<vmem>>, vector<8x8xf32>,
    %31 = vector.extract_strided_slice %22 {offsets = [1, 0, 0], sizes = [1, 8, 8], strides = [1, 1, 1]} : vector<4x8x8xf32> to vector<1x8x8xf32>
    %32 = vector.shape_cast %31 : vector<1x8x8xf32> to vector<8x8xf32>
    %33 = vector.extract_strided_slice %23 {offsets = [1, 0, 0], sizes = [1, 8, 1], strides = [1, 1, 1]} : vector<4x8x1xf32> to vector<1x8x1xf32>
    %34 = vector.shape_cast %33 : vector<1x8x1xf32> to vector<8x1xf32>
    %35 = vector.broadcast %34 : vector<8x1xf32> to vector<8x8xf32>
    %36 = arith.mulf %32, %35 : vector<8x8xf32>
    %c0_16 = arith.constant 0 : index
    %c8 = arith.constant 8 : index
    %37 = vector.load %arg10[%c0_16, %c8] : memref<8x32xf32, #tpu.memory_space<vmem>>, vector<8x8xf32>
    tpu.vector_store %arg10[%c0_16, %c8], %36 {strides = array<i32>} : memref<8x32xf32, #tpu.memory_space<vmem>>, vector<8x8xf32>,
    %38 = vector.extract_strided_slice %22 {offsets = [2, 0, 0], sizes = [1, 8, 8], strides = [1, 1, 1]} : vector<4x8x8xf32> to vector<1x8x8xf32>
    %39 = vector.shape_cast %38 : vector<1x8x8xf32> to vector<8x8xf32>
    %40 = vector.extract_strided_slice %23 {offsets = [2, 0, 0], sizes = [1, 8, 1], strides = [1, 1, 1]} : vector<4x8x1xf32> to vector<1x8x1xf32>
    %41 = vector.shape_cast %40 : vector<1x8x1xf32> to vector<8x1xf32>
    %42 = vector.broadcast %41 : vector<8x1xf32> to vector<8x8xf32>
    %43 = arith.mulf %39, %42 : vector<8x8xf32>
    %c0_17 = arith.constant 0 : index
    %c16 = arith.constant 16 : index
    %44 = vector.load %arg10[%c0_17, %c16] : memref<8x32xf32, #tpu.memory_space<vmem>>, vector<8x8xf32>
    tpu.vector_store %arg10[%c0_17, %c16], %43 {strides = array<i32>} : memref<8x32xf32, #tpu.memory_space<vmem>>, vector<8x8xf32>,
    %45 = vector.extract_strided_slice %22 {offsets = [3, 0, 0], sizes = [1, 8, 8], strides = [1, 1, 1]} : vector<4x8x8xf32> to vector<1x8x8xf32>
    %46 = vector.shape_cast %45 : vector<1x8x8xf32> to vector<8x8xf32>
    %47 = vector.extract_strided_slice %23 {offsets = [3, 0, 0], sizes = [1, 8, 1], strides = [1, 1, 1]} : vector<4x8x1xf32> to vector<1x8x1xf32>
    %48 = vector.shape_cast %47 : vector<1x8x1xf32> to vector<8x1xf32>
    %49 = vector.broadcast %48 : vector<8x1xf32> to vector<8x8xf32>
    %50 = arith.mulf %46, %49 : vector<8x8xf32>
    %c0_18 = arith.constant 0 : index
    %c24 = arith.constant 24 : index
    %51 = vector.load %arg10[%c0_18, %c24] : memref<8x32xf32, #tpu.memory_space<vmem>>, vector<8x8xf32>
    tpu.vector_store %arg10[%c0_18, %c24], %50 {strides = array<i32>} : memref<8x32xf32, #tpu.memory_space<vmem>>, vector<8x8xf32>,
    %c0_19 = arith.constant 0 : index
    %c0_20 = arith.constant 0 : index
    %52 = vector.load %arg10[%c0_19, %c0_20] : memref<8x32xf32, #tpu.memory_space<vmem>>, vector<8x32xf32>
    %c0_21 = arith.constant 0 : index
    %c0_22 = arith.constant 0 : index
    %53 = vector.load %arg5[%c0_21, %c0_22] : memref<32x32xf32, #tpu.memory_space<vmem>>, vector<32x32xf32>
    %cst_23 = arith.constant dense<0.000000e+00> : vector<8x32xf32>
    %54 = tpu.matmul %52, %53, %cst_23 {dimension_numbers = #tpu.dot_dimension_numbers<[1], [0], [0], [1], [0, 0, 1, 1], [], []>} : vector<8x32xf32>, vector<32x32xf32>, vector<8x32xf32> -> vector<8x32xf32>
    %c0_24 = arith.constant 0 : index
    %c0_25 = arith.constant 0 : index
    %55 = vector.load %arg6[%c0_24, %c0_25] : memref<1x32xf32, #tpu.memory_space<vmem>>, vector<1x32xf32>
    %56 = vector.broadcast %55 : vector<1x32xf32> to vector<8x32xf32>
    %57 = arith.addf %54, %56 : vector<8x32xf32>
    %c0_26 = arith.constant 0 : index
    %c0_27 = arith.constant 0 : index
    %c0_28 = arith.constant 0 : index
    %58 = vector.load %arg7[%c0_26, %c0_27, %c0_28] : memref<1x8x32xf32, #tpu.memory_space<vmem>>, vector<1x8x32xf32>
    %59 = vector.shape_cast %58 : vector<1x8x32xf32> to vector<8x32xf32>
    %60 = vector.shape_cast %57 : vector<8x32xf32> to vector<1x8x32xf32>
    tpu.vector_store %arg7[%c0_26, %c0_27, %c0_28], %60 {strides = array<i32>} : memref<1x8x32xf32, #tpu.memory_space<vmem>>, vector<1x8x32xf32>,
    return
  }
  func.func @transform_0(%arg0: i32, %arg1: i32) -> (i32, i32, i32) {
    %c0_i32 = arith.constant 0 : i32
    %c0_i32_0 = arith.constant 0 : i32
    %c0_i32_1 = arith.constant 0 : i32
    return %arg0, %c0_i32, %c0_i32_0 : i32, i32, i32
  }
  func.func @transform_1(%arg0: i32, %arg1: i32) -> (i32, i32) {
    %c0_i32 = arith.constant 0 : i32
    %c0_i32_0 = arith.constant 0 : i32
    %c0_i32_1 = arith.constant 0 : i32
    return %c0_i32, %c0_i32_0 : i32, i32
  }
  func.func @transform_2(%arg0: i32, %arg1: i32) -> (i32, i32) {
    %c0_i32 = arith.constant 0 : i32
    %c0_i32_0 = arith.constant 0 : i32
    %c0_i32_1 = arith.constant 0 : i32
    return %c0_i32, %c0_i32_0 : i32, i32
  }
  func.func @transform_3(%arg0: i32, %arg1: i32) -> (i32, i32) {
    %c0_i32 = arith.constant 0 : i32
    %c0_i32_0 = arith.constant 0 : i32
    %c0_i32_1 = arith.constant 0 : i32
    return %c0_i32, %c0_i32_0 : i32, i32
  }
  func.func @transform_4(%arg0: i32, %arg1: i32) -> (i32, i32) {
    %c0_i32 = arith.constant 0 : i32
    %c0_i32_0 = arith.constant 0 : i32
    %c0_i32_1 = arith.constant 0 : i32
    return %c0_i32, %c0_i32_0 : i32, i32
  }
  func.func @transform_5(%arg0: i32, %arg1: i32) -> (i32, i32, i32) {
    %c0_i32 = arith.constant 0 : i32
    %c0_i32_0 = arith.constant 0 : i32
    return %arg0, %arg1, %c0_i32 : i32, i32, i32
  }
}

</mosaic_0001>

<llo_original>
// kernel: tpu_custom_call.1
$region0: #{tpu_custom_call.1}
  #allocation0 [shape = 'u32[]', space=smem, size = 0x4, offset = 0x4, fixed_abs, tag = 'smem constant byte address 0x4 - core index']
  #allocation1 [shape = 'u32[144,128]{1,0:T(1,128)}', space=vmem, size = 0x12000, scoped, tag = 'internal scratch']
  #allocation2 [shape = 'f32[4,8,8]{2,1,0:T(8,128)}', space=vmem, size = 0x4000, scoped, tag = 'scratch operand']
  #allocation3 [shape = 'f32[4,8,8]{2,1,0:T(8,128)}', space=vmem, size = 0x4000, scoped, tag = 'scratch operand']
  #allocation4 [shape = 'f32[8,32]{1,0:T(8,128)}', space=vmem, size = 0x1000, scoped, tag = 'scratch operand']
  %s0 = inlined_call_operand.hbm [shape: f32[2,8,32], index: 0, kind: input, shape index: {}]
  %s1 = inlined_call_operand.hbm [shape: f32[32,32], index: 1, kind: input, shape index: {}]
  %s2 = inlined_call_operand.hbm [shape: f32[32,64], index: 2, kind: input, shape index: {}]
  %s3 = inlined_call_operand.hbm [shape: f32[32,32], index: 3, kind: input, shape index: {}]
  %s4 = inlined_call_operand.hbm [shape: f32[1,32], index: 4, kind: input, shape index: {}]
  %s5 = inlined_call_operand.hbm [shape: f32[2,8,32], index: 5, kind: output, shape index: {}]
  %s6 = sld [smem:[#allocation0]]
  $region77: #{tpu_custom_call.1} parent=0
    _
  %s8 = ssub.s32 1, %s6
  %s9 = scalar_select 0, %s8, %s6
  $region1: #{tpu_custom_call.1} parent=0
    #allocation5 [shape = 'u8[8192]{0}', space=vmem, size = 0x2000, scoped, tag = 'input window, operand 0']
    #allocation6 [shape = 's32[2]{0}', space=sflag, size = 0x8, scoped, tag = 'scoped memory for tpu_custom_call.1']
    #allocation7 [shape = 's32[2]{0}', space=sflag, size = 0x8, scoped, tag = 'scoped memory for tpu_custom_call.1']
    #allocation8 [shape = 'u8[16384]{0}', space=vmem, size = 0x4000, scoped, tag = 'input window, operand 1, single buffered']
    #allocation9 [shape = 's32[1]{0}', space=sflag, size = 0x4, scoped, tag = 'scoped memory for tpu_custom_call.1']
    #allocation10 [shape = 'u8[16384]{0}', space=vmem, size = 0x4000, scoped, tag = 'input window, operand 2, single buffered']
    #allocation11 [shape = 'u8[16384]{0}', space=vmem, size = 0x4000, scoped, tag = 'input window, operand 3, single buffered']
    #allocation12 [shape = 's32[1]{0}', space=sflag, size = 0x4, scoped, tag = 'scoped memory for tpu_custom_call.1']
    #allocation13 [shape = 'u8[512]{0}', space=vmem, size = 0x400, scoped, tag = 'input window, operand 4, single buffered']
    #allocation14 [shape = 'u8[8192]{0}', space=vmem, size = 0x2000, scoped, tag = 'output window, operand 0']
    %10 = vsyncpa [#allocation6], 0
    %s11 = scalar_lea.sflag [#allocation6], 1
    %12 = vsyncpa %s11, 0
    %13 = vsyncpa [#allocation9], 0
    %14 = vsyncpa [#allocation12], 0
    %15 = vsyncpa [#allocation7], 0
    %s16 = scalar_lea.sflag [#allocation7], 1
    %17 = vsyncpa %s16, 0
    loop: start=0, step=1, limit=4
    $region2: #{tpu_custom_call.1} parent=1 // loop_pre_header
      _
    $region3: #{tpu_custom_call.1} parent=1 // loop_header
      %s19 = sphi 0, %s23
      %p20 = scmp.ge.s32.totalorder %s19, 4
      %s26 = sphi 0, %s38
      %s27 = sphi 0, %s34
      %s28 = sphi 0, %s26
      %s29 = sphi 0, %s27
      %s30 = sphi 0, %s28
      %s31 = sphi 0, %s29
      %s41 = sphi 0, %s43
      %s44 = sphi 0, %s41
      %s45 = sphi 0, %s44
      %s61 = sphi 0, %s45
      %s65 = sphi 0, %s65
      %s67 = sphi 0, %s65
      %s68 = sphi 0, %s67
      %s82 = sphi 0, %s68
      %s86 = sphi 0, %s86
      %s88 = sphi 0, %s86
      %s89 = sphi 0, %s88
      %s103 = sphi 0, %s89
      %s107 = sphi 0, %s107
      %s109 = sphi 0, %s107
      %s110 = sphi 0, %s109
      %s124 = sphi 0, %s110
      %s128 = sphi 0, %s128
      %s130 = sphi 0, %s128
      %s131 = sphi 0, %s130
      %s145 = sphi 0, %s131
      %s153 = sphi 0, %s155
      %s156 = sphi 0, %s153
      %s157 = sphi 0, %s156
      %s173 = sphi 0, %s157
    $region4: #{tpu_custom_call.1} parent=1 // loop_header_branch
      %22 = sbr.rel (%p20) target = $region8
    $region5: #{tpu_custom_call.1} parent=1 // loop_body
      %s24 = ssub.s32 %s19, 1
      %s25 = ssub.s32 %s19, 2
      %s32 = sadd.s32 1, %s27
      %p33 = scmp.ge.s32.totalorder %s32, 1
      %s34 = scalar_select %p33, 0, %s32
      %s35 = sadd.s32 1, %s26
      %s36 = scalar_select %p33, %s35, %s26
      %p37 = scmp.ge.s32.totalorder %s36, 2
      %s38 = scalar_select %p37, 0, %s36
      %s39 = ssub.s32 %s26, %s38
      %p40 = scmp.eq.s32.totalorder %s39, 0
      %s42 = sadd.s32 %s41, 1
      %s43 = scalar_select %p40, %s41, %s42
      %p46 = pneg %p40
      %p47 = scmp.eq.s32.totalorder %s19, 1
      %p48 = por %p46, %p47
      %p49 = scmp.ne.s32.totalorder %s41, %s44
      %p50 = scmp.eq.s32.totalorder %s19, 0
      %p51 = por %p49, %p50
      %p52 = scmp.ne.s32.totalorder %s41, %s44
      %p53 = scmp.eq.s32.totalorder %s24, 1
      %p54 = por %p52, %p53
      %p55 = scmp.ne.s32.totalorder %s44, %s45
      %p56 = scmp.eq.s32.totalorder %s24, 0
      %p57 = por %p55, %p56
      %p58 = scmp.ne.s32.totalorder %s44, %s45
      %p59 = scmp.eq.s32.totalorder %s25, 1
      %p60 = por %p58, %p59
      %p62 = scmp.ne.s32.totalorder %s45, %s61
      %p63 = scmp.eq.s32.totalorder %s25, 0
      %p64 = por %p62, %p63
      %s66 = sadd.s32 %s65, 1
      %p69 = scmp.eq.s32.totalorder %s19, 1
      %p70 = scmp.ne.s32.totalorder %s65, %s67
      %p71 = scmp.eq.s32.totalorder %s19, 0
      %p72 = por %p70, %p71
      %p73 = scmp.ne.s32.totalorder %s65, %s67
      %p74 = scmp.eq.s32.totalorder %s24, 1
      %p75 = por %p73, %p74
      %p76 = scmp.ne.s32.totalorder %s67, %s68
      %p77 = scmp.eq.s32.totalorder %s24, 0
      %p78 = por %p76, %p77
      %p79 = scmp.ne.s32.totalorder %s67, %s68
      %p80 = scmp.eq.s32.totalorder %s25, 1
      %p81 = por %p79, %p80
      %p83 = scmp.ne.s32.totalorder %s68, %s82
      %p84 = scmp.eq.s32.totalorder %s25, 0
      %p85 = por %p83, %p84
      %s87 = sadd.s32 %s86, 1
      %p90 = scmp.eq.s32.totalorder %s19, 1
      %p91 = scmp.ne.s32.totalorder %s86, %s88
      %p92 = scmp.eq.s32.totalorder %s19, 0
      %p93 = por %p91, %p92
      %p94 = scmp.ne.s32.totalorder %s86, %s88
      %p95 = scmp.eq.s32.totalorder %s24, 1
      %p96 = por %p94, %p95
      %p97 = scmp.ne.s32.totalorder %s88, %s89
      %p98 = scmp.eq.s32.totalorder %s24, 0
      %p99 = por %p97, %p98
      %p100 = scmp.ne.s32.totalorder %s88, %s89
      %p101 = scmp.eq.s32.totalorder %s25, 1
      %p102 = por %p100, %p101
      %p104 = scmp.ne.s32.totalorder %s89, %s103
      %p105 = scmp.eq.s32.totalorder %s25, 0
      %p106 = por %p104, %p105
      %s108 = sadd.s32 %s107, 1
      %p111 = scmp.eq.s32.totalorder %s19, 1
      %p112 = scmp.ne.s32.totalorder %s107, %s109
      %p113 = scmp.eq.s32.totalorder %s19, 0
      %p114 = por %p112, %p113
      %p115 = scmp.ne.s32.totalorder %s107, %s109
      %p116 = scmp.eq.s32.totalorder %s24, 1
      %p117 = por %p115, %p116
      %p118 = scmp.ne.s32.totalorder %s109, %s110
      %p119 = scmp.eq.s32.totalorder %s24, 0
      %p120 = por %p118, %p119
      %p121 = scmp.ne.s32.totalorder %s109, %s110
      %p122 = scmp.eq.s32.totalorder %s25, 1
      %p123 = por %p121, %p122
      %p125 = scmp.ne.s32.totalorder %s110, %s124
      %p126 = scmp.eq.s32.totalorder %s25, 0
      %p127 = por %p125, %p126
      %s129 = sadd.s32 %s128, 1
      %p132 = scmp.eq.s32.totalorder %s19, 1
      %p133 = scmp.ne.s32.totalorder %s128, %s130
      %p134 = scmp.eq.s32.totalorder %s19, 0
      %p135 = por %p133, %p134
      %p136 = scmp.ne.s32.totalorder %s128, %s130
      %p137 = scmp.eq.s32.totalorder %s24, 1
      %p138 = por %p136, %p137
      %p139 = scmp.ne.s32.totalorder %s130, %s131
      %p140 = scmp.eq.s32.totalorder %s24, 0
      %p141 = por %p139, %p140
      %p142 = scmp.ne.s32.totalorder %s130, %s131
      %p143 = scmp.eq.s32.totalorder %s25, 1
      %p144 = por %p142, %p143
      %p146 = scmp.ne.s32.totalorder %s131, %s145
      %p147 = scmp.eq.s32.totalorder %s25, 0
      %p148 = por %p146, %p147
      %s149 = ssub.s32 %s26, %s38
      %s150 = ssub.s32 %s27, %s34
      %s151 = sor.u32 %s149, %s150
      %p152 = scmp.eq.s32.totalorder %s151, 0
      %s154 = sadd.s32 %s153, 1
      %s155 = scalar_select %p152, %s153, %s154
      %p158 = pneg %p152
      %p159 = scmp.eq.s32.totalorder %s19, 1
      %p160 = por %p158, %p159
      %p161 = scmp.ne.s32.totalorder %s153, %s156
      %p162 = scmp.eq.s32.totalorder %s19, 0
      %p163 = por %p161, %p162
      %p164 = scmp.ne.s32.totalorder %s153, %s156
      %p165 = scmp.eq.s32.totalorder %s24, 1
      %p166 = por %p164, %p165
      %p167 = scmp.ne.s32.totalorder %s156, %s157
      %p168 = scmp.eq.s32.totalorder %s24, 0
      %p169 = por %p167, %p168
      %p170 = scmp.ne.s32.totalorder %s156, %s157
      %p171 = scmp.eq.s32.totalorder %s25, 1
      %p172 = por %p170, %p171
      %p174 = scmp.ne.s32.totalorder %s157, %s173
      %p175 = scmp.eq.s32.totalorder %s25, 0
      %p176 = por %p174, %p175
      %p177 = scmp.le.s32.totalorder 1, %s19
      %p178 = scmp.lt.s32.totalorder %s19, 3
      %p179 = pnand %p177, %p178
      %p180 = pneg %p179
      // Predicated region
      $region9: #{tpu_custom_call.1} parent=5 // pred_check
        _
      $region10: #{tpu_custom_call.1} parent=5 // pred_check_branch
        %182 = sbr.rel (%p179) target = $region12
      $region11: #{tpu_custom_call.1} parent=5 // pred_region
        %s183 = ssub.s32 %s19, 1
        // Predicated region
        $region13: #{tpu_custom_call.1} parent=11 // pred_check
          %p184 = pneg %p78
        $region14: #{tpu_custom_call.1} parent=11 // pred_check_branch
          %186 = sbr.rel (%p184) target = $region16
        $region15: #{tpu_custom_call.1} parent=11 // pred_region
          %s188 = ssub.s32 512, 512
          %189 = vsyncadd [#allocation9], %s188
          %s190 = sshll.u32 [#allocation8], 4
          %s191 = int_to_ptr.vmem [resolvable:$true] %s190
          %196 = dma.hbm_to_vmem [thread:$0]  %s1, 512, %s191, [#allocation9], 128, 128, 8
        $region16: #{tpu_custom_call.1} parent=11 // pred_fallthru
          _
        // Predicated region
        $region17: #{tpu_custom_call.1} parent=11 // pred_check
          %p197 = pneg %p99
        $region18: #{tpu_custom_call.1} parent=11 // pred_check_branch
          %199 = sbr.rel (%p197) target = $region20
        $region19: #{tpu_custom_call.1} parent=11 // pred_region
          %s201 = ssub.s32 512, 512
          %202 = vsyncadd [#allocation9], %s201
          %s203 = sshll.u32 [#allocation10], 4
          %s204 = int_to_ptr.vmem [resolvable:$true] %s203
          %209 = dma.hbm_to_vmem [thread:$0]  %s2, 512, %s204, [#allocation9], 128, 128, 8
        $region20: #{tpu_custom_call.1} parent=11 // pred_fallthru
          _
        // Predicated region
        $region21: #{tpu_custom_call.1} parent=11 // pred_check
          %p210 = pneg %p120
        $region22: #{tpu_custom_call.1} parent=11 // pred_check_branch
          %212 = sbr.rel (%p210) target = $region24
        $region23: #{tpu_custom_call.1} parent=11 // pred_region
          %s214 = ssub.s32 512, 512
          %215 = vsyncadd [#allocation12], %s214
          %s216 = sshll.u32 [#allocation11], 4
          %s217 = int_to_ptr.vmem [resolvable:$true] %s216
          %222 = dma.hbm_to_vmem [thread:$0]  %s3, 512, %s217, [#allocation12], 128, 128, 8
        $region24: #{tpu_custom_call.1} parent=11 // pred_fallthru
          _
        // Predicated region
        $region25: #{tpu_custom_call.1} parent=11 // pred_check
          %p223 = pneg %p141
        $region26: #{tpu_custom_call.1} parent=11 // pred_check_branch
          %225 = sbr.rel (%p223) target = $region28
        $region27: #{tpu_custom_call.1} parent=11 // pred_region
          %s227 = ssub.s32 16, 16
          %228 = vsyncadd [#allocation12], %s227
          %s230 = sshll.u32 [#allocation13], 4
          %s231 = int_to_ptr.vmem [resolvable:$true] %s230
          %233 = dma.hbm_to_vmem [thread:$0]  %s4, 16, %s231, [#allocation12]
        $region28: #{tpu_custom_call.1} parent=11 // pred_fallthru
          _
      $region12: #{tpu_custom_call.1} parent=5 // pred_fallthru
        _
      %p234 = scmp.lt.s32.totalorder %s19, 2
      // Predicated region
      $region29: #{tpu_custom_call.1} parent=5 // pred_check
        %p235 = pneg %p234
      $region30: #{tpu_custom_call.1} parent=5 // pred_check_branch
        %237 = sbr.rel (%p235) target = $region32
      $region31: #{tpu_custom_call.1} parent=5 // pred_region
        // Predicated region
        $region33: #{tpu_custom_call.1} parent=31 // pred_check
          %p238 = pneg %p51
        $region34: #{tpu_custom_call.1} parent=31 // pred_check_branch
          %240 = sbr.rel (%p238) target = $region36
        $region35: #{tpu_custom_call.1} parent=31 // pred_region
          %s241 = sand.u32 %s41, 1
          %s242 = scalar_lea.sflag [#allocation6], %s241
          %s243 = sand.u32 %s41, 1
          %s244 = smul.addr %s243, 8
          %s245 = scalar_lea.vmem [#allocation5], %s244
          %s247 = ssub.s32 128, 128
          %248 = vsyncadd %s242, %s247
          %s249 = smul.addr %s26, 128
          %s250 = scalar_lea.hbm %s0, %s249
          %s252 = sshll.u32 %s245, 4
          %s253 = int_to_ptr.vmem [resolvable:$true] %s252
          %255 = dma.hbm_to_vmem [thread:$0]  %s250, 128, %s253, %s242
        $region36: #{tpu_custom_call.1} parent=31 // pred_fallthru
          _
      $region32: #{tpu_custom_call.1} parent=5 // pred_fallthru
        _
      %p256 = scmp.le.s32.totalorder 1, %s19
      %p257 = scmp.lt.s32.totalorder %s19, 3
      %p258 = pnand %p256, %p257
      %p259 = pneg %p258
      // Predicated region
      $region37: #{tpu_custom_call.1} parent=5 // pred_check
        _
      $region38: #{tpu_custom_call.1} parent=5 // pred_check_branch
        %261 = sbr.rel (%p258) target = $region40
      $region39: #{tpu_custom_call.1} parent=5 // pred_region
        %s262 = ssub.s32 %s19, 1
        %s263 = sand.u32 %s44, 1
        %s264 = scalar_lea.sflag [#allocation6], %s263
        %s265 = sand.u32 %s44, 1
        %s266 = smul.addr %s265, 8
        %s267 = scalar_lea.vmem [#allocation5], %s266
        // Predicated region
        $region41: #{tpu_custom_call.1} parent=39 // pred_check
          %p268 = pneg %p57
        $region42: #{tpu_custom_call.1} parent=39 // pred_check_branch
          %270 = sbr.rel (%p268) target = $region44
        $region43: #{tpu_custom_call.1} parent=39 // pred_region
          %271 = dma.done %s264, 128
        $region44: #{tpu_custom_call.1} parent=39 // pred_fallthru
          _
        // Predicated region
        $region45: #{tpu_custom_call.1} parent=39 // pred_check
          %p272 = pneg %p78
        $region46: #{tpu_custom_call.1} parent=39 // pred_check_branch
          %274 = sbr.rel (%p272) target = $region48
        $region47: #{tpu_custom_call.1} parent=39 // pred_region
          %275 = dma.done [#allocation9], 512
        $region48: #{tpu_custom_call.1} parent=39 // pred_fallthru
          _
        // Predicated region
        $region49: #{tpu_custom_call.1} parent=39 // pred_check
          %p276 = pneg %p99
        $region50: #{tpu_custom_call.1} parent=39 // pred_check_branch
          %278 = sbr.rel (%p276) target = $region52
        $region51: #{tpu_custom_call.1} parent=39 // pred_region
          %279 = dma.done [#allocation9], 512
        $region52: #{tpu_custom_call.1} parent=39 // pred_fallthru
          _
        // Predicated region
        $region53: #{tpu_custom_call.1} parent=39 // pred_check
          %p280 = pneg %p120
        $region54: #{tpu_custom_call.1} parent=39 // pred_check_branch
          %282 = sbr.rel (%p280) target = $region56
        $region55: #{tpu_custom_call.1} parent=39 // pred_region
          %283 = dma.done [#allocation12], 512
        $region56: #{tpu_custom_call.1} parent=39 // pred_fallthru
          _
        // Predicated region
        $region57: #{tpu_custom_call.1} parent=39 // pred_check
          %p284 = pneg %p141
        $region58: #{tpu_custom_call.1} parent=39 // pred_check_branch
          %286 = sbr.rel (%p284) target = $region60
        $region59: #{tpu_custom_call.1} parent=39 // pred_region
          %287 = dma.done [#allocation12], 16
        $region60: #{tpu_custom_call.1} parent=39 // pred_fallthru
          _
        %s288 = sand.u32 %s44, 1
        %s289 = scalar_lea.sflag [#allocation6], %s288
        %s290 = sand.u32 %s44, 1
        %s291 = smul.addr %s290, 8
        %s292 = scalar_lea.vmem [#allocation5], %s291
        %p293 = pneg %p57
        %p294 = pneg %p54
        %p295 = pneg %p78
        %p296 = pneg %p75
        %p297 = pneg %p99
        %p298 = pneg %p96
        %p299 = pneg %p120
        %p300 = pneg %p117
        %p301 = pneg %p141
        %p302 = pneg %p138
        %p303 = pneg %p169
        %p304 = pneg %p166
        %s305 = sand.u32 %s156, 1
        %s306 = scalar_lea.sflag [#allocation7], %s305
        %s307 = sand.u32 %s156, 1
        %s308 = smul.addr %s307, 8
        %s309 = scalar_lea.vmem [#allocation14], %s308
        %p310 = scmp.eq.s32.totalorder %s29, 0
        // Predicated region
        $region61: #{tpu_custom_call.1} parent=39 // pred_check
          %p311 = pneg %p310
        $region62: #{tpu_custom_call.1} parent=39 // pred_check_branch
          %313 = sbr.rel (%p311) target = $region64
        $region63: #{tpu_custom_call.1} parent=39 // pred_region
          %v314 = vld [vmem:[%s267] sm:$0xff]
          %v315 = vld [vmem:[#allocation10] sm:$0xff]
          %v316 = vld [vmem:[#allocation10 + $0x8] sm:$0xff]
          %v317 = vld [vmem:[#allocation10 + $0x10] sm:$0xff]
          %v318 = vld [vmem:[#allocation10 + $0x18] sm:$0xff]
          %vm319 = vcmask 261120
          %v321 = vsel %vm319, %v314, 0
          %323 = vmatprep.subr.mxu0 0.0
          %324 = vmatpush1.msra.mxu0 %v315
          %325 = vmatprep.subr.mxu0 0.0
          %326 = vmatpush1.msra.mxu0 %v316
          %327 = vmatprep.subr.mxu0 0.0
          %328 = vmatpush1.msra.mxu0 %v317
          %329 = vmatprep.subr.mxu0 0.0
          %330 = vmatpush1.msra.mxu0 %v318
          %331 = vmatprep.subr.mxu0 0.0
          %332 = vmatpush1.msra.mxu0 0.0
          %333 = vmatprep.subr.mxu0 0.0
          %334 = vmatpush1.msra.mxu0 0.0
          %335 = vmatprep.subr.mxu0 0.0
          %336 = vmatpush1.msra.mxu0 0.0
          %337 = vmatprep.subr.mxu0 0.0
          %338 = vmatpush1.msra.mxu0 0.0
          %339 = vmatprep.subr.mxu0 0.0
          %340 = vmatpush1.msra.mxu0 0.0
          %341 = vmatprep.subr.mxu0 0.0
          %342 = vmatpush1.msra.mxu0 0.0
          %343 = vmatprep.subr.mxu0 0.0
          %344 = vmatpush1.msra.mxu0 0.0
          %345 = vmatprep.subr.mxu0 0.0
          %346 = vmatpush1.msra.mxu0 0.0
          %347 = vmatprep.subr.mxu0 0.0
          %348 = vmatpush1.msra.mxu0 0.0
          %349 = vmatprep.subr.mxu0 0.0
          %350 = vmatpush1.msra.mxu0 0.0
          %351 = vmatprep.subr.mxu0 0.0
          %352 = vmatpush1.msra.mxu0 0.0
          %353 = vmatprep.subr.mxu0 0.0
          %354 = vmatpush1.msra.mxu0 0.0
          %355 = vmatprep.subr.mxu0 0.0
          %356 = vmatpush1.msra.mxu0 0.0
          %357 = vmatprep.subr.mxu0 0.0
          %358 = vmatpush1.msra.mxu0 0.0
          %359 = vmatprep.subr.mxu0 0.0
          %360 = vmatpush1.msra.mxu0 0.0
          %361 = vmatprep.subr.mxu0 0.0
          %362 = vmatpush1.msra.mxu0 0.0
          %363 = vmatprep.subr.mxu0 0.0
          %364 = vmatpush1.msra.mxu0 0.0
          %365 = vmatprep.subr.mxu0 0.0
          %366 = vmatpush1.msra.mxu0 0.0
          %367 = vmatprep.subr.mxu0 0.0
          %368 = vmatpush1.msra.mxu0 0.0
          %369 = vmatprep.subr.mxu0 0.0
          %370 = vmatpush1.msra.mxu0 0.0
          %371 = vmatprep.subr.mxu0 0.0
          %372 = vmatpush1.msra.mxu0 0.0
          %373 = vmatprep.subr.mxu0 0.0
          %374 = vmatpush1.msra.mxu0 0.0
          %375 = vmatprep.subr.mxu0 0.0
          %376 = vmatpush1.msra.mxu0 0.0
          %377 = vmatprep.subr.mxu0 0.0
          %378 = vmatpush1.msra.mxu0 0.0
          %379 = vmatprep.subr.mxu0 0.0
          %380 = vmatpush1.msra.mxu0 0.0
          %381 = vmatprep.subr.mxu0 0.0
          %382 = vmatpush1.msra.mxu0 0.0
          %383 = vmatprep.subr.mxu0 0.0
          %384 = vmatpush1.msra.mxu0 0.0
          %385 = vmatprep.subr.mxu0 0.0
          %386 = vmatpush1.msra.mxu0 0.0
          %387 = vmatprep.mubr.f32.mxu0 0.0
          %388 = vmatmul.mubr.f32.gmra.mrb[0].mxu0 %v321
          %v389 = vpop.f32.mrb[0].mxu0
          %v390 = vadd.f32 0.0, %v389
          %v391 = vpop.f32.mrb[0].mxu0
          %392 = vdwg.mxu0
          %393 = vxpose.xlu0.b32.start [1/16] %v390, 128
          %394 = vxpose.xlu0.b32.cont [2/16] 0.0, 128
          %395 = vxpose.xlu0.b32.cont [3/16] 0.0, 128
          %396 = vxpose.xlu0.b32.cont [4/16] 0.0, 128
          %397 = vxpose.xlu0.b32.cont [5/16] 0.0, 128
          %398 = vxpose.xlu0.b32.cont [6/16] 0.0, 128
          %399 = vxpose.xlu0.b32.cont [7/16] 0.0, 128
          %400 = vxpose.xlu0.b32.cont [8/16] 0.0, 128
          %401 = vxpose.xlu0.b32.cont [9/16] 0.0, 128
          %402 = vxpose.xlu0.b32.cont [10/16] 0.0, 128
          %403 = vxpose.xlu0.b32.cont [11/16] 0.0, 128
          %404 = vxpose.xlu0.b32.cont [12/16] 0.0, 128
          %405 = vxpose.xlu0.b32.cont [13/16] 0.0, 128
          %406 = vxpose.xlu0.b32.cont [14/16] 0.0, 128
          %407 = vxpose.xlu0.b32.cont [15/16] 0.0, 128
          %408 = vxpose.xlu0.b32.end [16/16] 0.0, 128
          %v409 = vpop.trf.xlu0
          %v410 = vpop.trf.xlu0
          %v411 = vpop.trf.xlu0
          %v412 = vpop.trf.xlu0
          %v413 = vpop.trf.xlu0
          %v414 = vpop.trf.xlu0
          %v415 = vpop.trf.xlu0
          %v416 = vpop.trf.xlu0
          %v417 = vpop.trf.xlu0
          %v418 = vpop.trf.xlu0
          %v419 = vpop.trf.xlu0
          %v420 = vpop.trf.xlu0
          %v421 = vpop.trf.xlu0
          %v422 = vpop.trf.xlu0
          %v423 = vpop.trf.xlu0
          %v424 = vpop.trf.xlu0
          %vm425 = vcmask 64512
          %426 = vst.msk [vmem:[#allocation2] sm:$0xff] %vm425, %v409
          %427 = vst.msk [vmem:[#allocation2 + $0x8] sm:$0xff] %vm425, %v410
          %428 = vst.msk [vmem:[#allocation2 + $0x10] sm:$0xff] %vm425, %v411
          %429 = vst.msk [vmem:[#allocation2 + $0x18] sm:$0xff] %vm425, %v412
          %431 = vrot.lane.b32.xlu0 %v390, 120
          %v432 = vpop.permute.xlu0 %431
          %433 = vrot.lane.b32.xlu0 %v390, 112
          %v434 = vpop.permute.xlu0 %433
          %435 = vrot.lane.b32.xlu0 %v390, 104
          %v436 = vpop.permute.xlu0 %435
          %437 = vrot.lane.b32.xlu0 %v390, 96
          %v438 = vpop.permute.xlu0 %437
          %439 = vrot.lane.b32.xlu0 %v432, 96
          %v440 = vpop.permute.xlu0 %439
          %441 = vrot.lane.b32.xlu0 %v434, 96
          %v442 = vpop.permute.xlu0 %441
          %443 = vrot.lane.b32.xlu0 %v436, 96
          %v444 = vpop.permute.xlu0 %443
          %v449 = vcombine.low %v438, %v442
          %v450 = vcombine.high %v438, %v442
          %v452 = vunpack.c.l.s4 1983009808
          %v453 = vunpack.c.0.s8 %v452
          %v454 = vlaneseq
          %v455 = vshrl.u32 %v454, 7
          %v456 = vsub.s32 %v453, %v455
          %v457 = vrot.slane %v449, %v456
          %v459 = vunpack.c.l.s4 1983009808
          %v460 = vunpack.c.0.s8 %v459
          %v461 = vlaneseq
          %v462 = vshrl.u32 %v461, 7
          %v463 = vsub.s32 %v460, %v462
          %v464 = vrot.slane %v450, %v463
          %v465 = vcombine.low %v440, %v444
          %v466 = vcombine.high %v440, %v444
          %v468 = vunpack.c.l.s4 1983009808
          %v469 = vunpack.c.0.s8 %v468
          %v470 = vlaneseq
          %v471 = vshrl.u32 %v470, 7
          %v472 = vsub.s32 %v469, %v471
          %v473 = vrot.slane %v465, %v472
          %v475 = vunpack.c.l.s4 1983009808
          %v476 = vunpack.c.0.s8 %v475
          %v477 = vlaneseq
          %v478 = vshrl.u32 %v477, 7
          %v479 = vsub.s32 %v476, %v478
          %v480 = vrot.slane %v466, %v479
          %v481 = vcombine.low %v457, %v473
          %v482 = vcombine.high %v457, %v473
          %v484 = vunpack.c.l.s4 1934713408
          %v485 = vunpack.c.0.s8 %v484
          %v486 = vlaneseq
          %v487 = vshrl.u32 %v486, 7
          %v488 = vsub.s32 %v485, %v487
          %v489 = vrot.slane %v481, %v488
          %v491 = vunpack.c.l.s4 1934713408
          %v492 = vunpack.c.0.s8 %v491
          %v493 = vlaneseq
          %v494 = vshrl.u32 %v493, 7
          %v495 = vsub.s32 %v492, %v494
          %v496 = vrot.slane %v482, %v495
          %v497 = vcombine.low %v464, %v480
          %v498 = vcombine.high %v464, %v480
          %v500 = vunpack.c.l.s4 1934713408
          %v501 = vunpack.c.0.s8 %v500
          %v502 = vlaneseq
          %v503 = vshrl.u32 %v502, 7
          %v504 = vsub.s32 %v501, %v503
          %v505 = vrot.slane %v497, %v504
          %v507 = vunpack.c.l.s4 1934713408
          %v508 = vunpack.c.0.s8 %v507
          %v509 = vlaneseq
          %v510 = vshrl.u32 %v509, 7
          %v511 = vsub.s32 %v508, %v510
          %v512 = vrot.slane %v498, %v511
          %v513 = vcombine.high %v489, 0.0
          %v514 = vcombine.high %v496, 0.0
          %v515 = vcombine.high %v505, 0.0
          %v516 = vcombine.high %v512, 0.0
          %v517 = vcombine.low %v489, %v496
          %v519 = vunpack.c.l.s4 1983009808
          %v520 = vunpack.c.0.s8 %v519
          %v521 = vlaneseq
          %v522 = vshrl.u32 %v521, 7
          %v523 = vsub.s32 %v520, %v522
          %v524 = vrot.slane %v517, %v523
          %v525 = vcombine.low %v513, %v514
          %v527 = vunpack.c.l.s4 1983009808
          %v528 = vunpack.c.0.s8 %v527
          %v529 = vlaneseq
          %v530 = vshrl.u32 %v529, 7
          %v531 = vsub.s32 %v528, %v530
          %v532 = vrot.slane %v525, %v531
          %v533 = vcombine.low %v505, %v512
          %v535 = vunpack.c.l.s4 1983009808
          %v536 = vunpack.c.0.s8 %v535
          %v537 = vlaneseq
          %v538 = vshrl.u32 %v537, 7
          %v539 = vsub.s32 %v536, %v538
          %v540 = vrot.slane %v533, %v539
          %v541 = vcombine.low %v515, %v516
          %v543 = vunpack.c.l.s4 1983009808
          %v544 = vunpack.c.0.s8 %v543
          %v545 = vlaneseq
          %v546 = vshrl.u32 %v545, 7
          %v547 = vsub.s32 %v544, %v546
          %v548 = vrot.slane %v541, %v547
          %v549 = vcombine.low %v524, %v532
          %v550 = vcombine.high %v524, %v532
          %v552 = vunpack.c.l.s4 1934713408
          %v553 = vunpack.c.0.s8 %v552
          %v554 = vlaneseq
          %v555 = vshrl.u32 %v554, 7
          %v556 = vsub.s32 %v553, %v555
          %v557 = vrot.slane %v549, %v556
          %v559 = vunpack.c.l.s4 1934713408
          %v560 = vunpack.c.0.s8 %v559
          %v561 = vlaneseq
          %v562 = vshrl.u32 %v561, 7
          %v563 = vsub.s32 %v560, %v562
          %v564 = vrot.slane %v550, %v563
          %v565 = vcombine.low %v540, %v548
          %v566 = vcombine.high %v540, %v548
          %v568 = vunpack.c.l.s4 1934713408
          %v569 = vunpack.c.0.s8 %v568
          %v570 = vlaneseq
          %v571 = vshrl.u32 %v570, 7
          %v572 = vsub.s32 %v569, %v571
          %v573 = vrot.slane %v565, %v572
          %v575 = vunpack.c.l.s4 1934713408
          %v576 = vunpack.c.0.s8 %v575
          %v577 = vlaneseq
          %v578 = vshrl.u32 %v577, 7
          %v579 = vsub.s32 %v576, %v578
          %v580 = vrot.slane %v566, %v579
          %v581 = vcombine.low %v557, %v573
          %v582 = vcombine.high %v557, %v573
          %v583 = vcombine.low %v564, %v580
          %v584 = vcombine.high %v564, %v580
          %585 = vst.msk [vmem:[#allocation3] sm:$0xff] %vm425, %v581
          %586 = vst.msk [vmem:[#allocation3 + $0x8] sm:$0xff] %vm425, %v582
          %587 = vst.msk [vmem:[#allocation3 + $0x10] sm:$0xff] %vm425, %v583
          %588 = vst.msk [vmem:[#allocation3 + $0x18] sm:$0xff] %vm425, %v584
        $region64: #{tpu_custom_call.1} parent=39 // pred_fallthru
          _
        %s589 = smul.u32 %s29, 8
        %s590 = scalar_lea.vmem %s267, %s589 [#allocation5]
        %v591 = vld [vmem:[%s590] sm:$0xff]
        %v592 = vld [vmem:[#allocation8] sm:$0xff]
        %v593 = vld [vmem:[#allocation8 + $0x8] sm:$0xff]
        %v594 = vld [vmem:[#allocation8 + $0x10] sm:$0xff]
        %v595 = vld [vmem:[#allocation8 + $0x18] sm:$0xff]
        %vm596 = vcmask 261120
        %v598 = vsel %vm596, %v591, 0
        %600 = vmatprep.subr.mxu0 0.0
        %601 = vmatpush1.msra.mxu0 %v592
        %602 = vmatprep.subr.mxu0 0.0
        %603 = vmatpush1.msra.mxu0 %v593
        %604 = vmatprep.subr.mxu0 0.0
        %605 = vmatpush1.msra.mxu0 %v594
        %606 = vmatprep.subr.mxu0 0.0
        %607 = vmatpush1.msra.mxu0 %v595
        %608 = vmatprep.subr.mxu0 0.0
        %609 = vmatpush1.msra.mxu0 0.0
        %610 = vmatprep.subr.mxu0 0.0
        %611 = vmatpush1.msra.mxu0 0.0
        %612 = vmatprep.subr.mxu0 0.0
        %613 = vmatpush1.msra.mxu0 0.0
        %614 = vmatprep.subr.mxu0 0.0
        %615 = vmatpush1.msra.mxu0 0.0
        %616 = vmatprep.subr.mxu0 0.0
        %617 = vmatpush1.msra.mxu0 0.0
        %618 = vmatprep.subr.mxu0 0.0
        %619 = vmatpush1.msra.mxu0 0.0
        %620 = vmatprep.subr.mxu0 0.0
        %621 = vmatpush1.msra.mxu0 0.0
        %622 = vmatprep.subr.mxu0 0.0
        %623 = vmatpush1.msra.mxu0 0.0
        %624 = vmatprep.subr.mxu0 0.0
        %625 = vmatpush1.msra.mxu0 0.0
        %626 = vmatprep.subr.mxu0 0.0
        %627 = vmatpush1.msra.mxu0 0.0
        %628 = vmatprep.subr.mxu0 0.0
        %629 = vmatpush1.msra.mxu0 0.0
        %630 = vmatprep.subr.mxu0 0.0
        %631 = vmatpush1.msra.mxu0 0.0
        %632 = vmatprep.subr.mxu0 0.0
        %633 = vmatpush1.msra.mxu0 0.0
        %634 = vmatprep.subr.mxu0 0.0
        %635 = vmatpush1.msra.mxu0 0.0
        %636 = vmatprep.subr.mxu0 0.0
        %637 = vmatpush1.msra.mxu0 0.0
        %638 = vmatprep.subr.mxu0 0.0
        %639 = vmatpush1.msra.mxu0 0.0
        %640 = vmatprep.subr.mxu0 0.0
        %641 = vmatpush1.msra.mxu0 0.0
        %642 = vmatprep.subr.mxu0 0.0
        %643 = vmatpush1.msra.mxu0 0.0
        %644 = vmatprep.subr.mxu0 0.0
        %645 = vmatpush1.msra.mxu0 0.0
        %646 = vmatprep.subr.mxu0 0.0
        %647 = vmatpush1.msra.mxu0 0.0
        %648 = vmatprep.subr.mxu0 0.0
        %649 = vmatpush1.msra.mxu0 0.0
        %650 = vmatprep.subr.mxu0 0.0
        %651 = vmatpush1.msra.mxu0 0.0
        %652 = vmatprep.subr.mxu0 0.0
        %653 = vmatpush1.msra.mxu0 0.0
        %654 = vmatprep.subr.mxu0 0.0
        %655 = vmatpush1.msra.mxu0 0.0
        %656 = vmatprep.subr.mxu0 0.0
        %657 = vmatpush1.msra.mxu0 0.0
        %658 = vmatprep.subr.mxu0 0.0
        %659 = vmatpush1.msra.mxu0 0.0
        %660 = vmatprep.subr.mxu0 0.0
        %661 = vmatpush1.msra.mxu0 0.0
        %662 = vmatprep.subr.mxu0 0.0
        %663 = vmatpush1.msra.mxu0 0.0
        %664 = vmatprep.mubr.f32.mxu0 0.0
        %665 = vmatmul.mubr.f32.gmra.mrb[0].mxu0 %v598
        %v666 = vpop.f32.mrb[0].mxu0
        %v667 = vadd.f32 0.0, %v666
        %v668 = vpop.f32.mrb[0].mxu0
        %669 = vdwg.mxu0
        %671 = vrot.lane.b32.xlu0 %v667, 120
        %v672 = vpop.permute.xlu0 %671
        %674 = vrot.lane.b32.xlu0 %v667, 112
        %v675 = vpop.permute.xlu0 %674
        %677 = vrot.lane.b32.xlu0 %v667, 104
        %v678 = vpop.permute.xlu0 %677
        %v680 = vcombine.low %v667, %v675
        %v681 = vcombine.high %v667, %v675
        %v683 = vunpack.c.l.s4 1983009808
        %v684 = vunpack.c.0.s8 %v683
        %v685 = vlaneseq
        %v686 = vshrl.u32 %v685, 7
        %v687 = vsub.s32 %v684, %v686
        %v688 = vrot.slane %v680, %v687
        %v690 = vunpack.c.l.s4 1983009808
        %v691 = vunpack.c.0.s8 %v690
        %v692 = vlaneseq
        %v693 = vshrl.u32 %v692, 7
        %v694 = vsub.s32 %v691, %v693
        %v695 = vrot.slane %v681, %v694
        %v696 = vcombine.low %v672, %v678
        %v697 = vcombine.high %v672, %v678
        %v699 = vunpack.c.l.s4 1983009808
        %v700 = vunpack.c.0.s8 %v699
        %v701 = vlaneseq
        %v702 = vshrl.u32 %v701, 7
        %v703 = vsub.s32 %v700, %v702
        %v704 = vrot.slane %v696, %v703
        %v706 = vunpack.c.l.s4 1983009808
        %v707 = vunpack.c.0.s8 %v706
        %v708 = vlaneseq
        %v709 = vshrl.u32 %v708, 7
        %v710 = vsub.s32 %v707, %v709
        %v711 = vrot.slane %v697, %v710
        %v712 = vcombine.low %v688, %v704
        %v713 = vcombine.high %v688, %v704
        %v715 = vunpack.c.l.s4 1934713408
        %v716 = vunpack.c.0.s8 %v715
        %v717 = vlaneseq
        %v718 = vshrl.u32 %v717, 7
        %v719 = vsub.s32 %v716, %v718
        %v720 = vrot.slane %v712, %v719
        %v722 = vunpack.c.l.s4 1934713408
        %v723 = vunpack.c.0.s8 %v722
        %v724 = vlaneseq
        %v725 = vshrl.u32 %v724, 7
        %v726 = vsub.s32 %v723, %v725
        %v727 = vrot.slane %v713, %v726
        %v728 = vcombine.low %v695, %v711
        %v729 = vcombine.high %v695, %v711
        %v731 = vunpack.c.l.s4 1934713408
        %v732 = vunpack.c.0.s8 %v731
        %v733 = vlaneseq
        %v734 = vshrl.u32 %v733, 7
        %v735 = vsub.s32 %v732, %v734
        %v736 = vrot.slane %v728, %v735
        %v738 = vunpack.c.l.s4 1934713408
        %v739 = vunpack.c.0.s8 %v738
        %v740 = vlaneseq
        %v741 = vshrl.u32 %v740, 7
        %v742 = vsub.s32 %v739, %v741
        %v743 = vrot.slane %v729, %v742
        %v744 = vcombine.high %v720, 0.0
        %v745 = vcombine.high %v727, 0.0
        %v746 = vcombine.high %v736, 0.0
        %v747 = vcombine.high %v743, 0.0
        %v748 = vcombine.low %v720, %v727
        %v750 = vunpack.c.l.s4 1983009808
        %v751 = vunpack.c.0.s8 %v750
        %v752 = vlaneseq
        %v753 = vshrl.u32 %v752, 7
        %v754 = vsub.s32 %v751, %v753
        %v755 = vrot.slane %v748, %v754
        %v756 = vcombine.low %v744, %v745
        %v758 = vunpack.c.l.s4 1983009808
        %v759 = vunpack.c.0.s8 %v758
        %v760 = vlaneseq
        %v761 = vshrl.u32 %v760, 7
        %v762 = vsub.s32 %v759, %v761
        %v763 = vrot.slane %v756, %v762
        %v764 = vcombine.low %v736, %v743
        %v766 = vunpack.c.l.s4 1983009808
        %v767 = vunpack.c.0.s8 %v766
        %v768 = vlaneseq
        %v769 = vshrl.u32 %v768, 7
        %v770 = vsub.s32 %v767, %v769
        %v771 = vrot.slane %v764, %v770
        %v772 = vcombine.low %v746, %v747
        %v774 = vunpack.c.l.s4 1983009808
        %v775 = vunpack.c.0.s8 %v774
        %v776 = vlaneseq
        %v777 = vshrl.u32 %v776, 7
        %v778 = vsub.s32 %v775, %v777
        %v779 = vrot.slane %v772, %v778
        %v780 = vcombine.low %v755, %v763
        %v781 = vcombine.high %v755, %v763
        %v783 = vunpack.c.l.s4 1934713408
        %v784 = vunpack.c.0.s8 %v783
        %v785 = vlaneseq
        %v786 = vshrl.u32 %v785, 7
        %v787 = vsub.s32 %v784, %v786
        %v788 = vrot.slane %v780, %v787
        %v790 = vunpack.c.l.s4 1934713408
        %v791 = vunpack.c.0.s8 %v790
        %v792 = vlaneseq
        %v793 = vshrl.u32 %v792, 7
        %v794 = vsub.s32 %v791, %v793
        %v795 = vrot.slane %v781, %v794
        %v796 = vcombine.low %v771, %v779
        %v797 = vcombine.high %v771, %v779
        %v799 = vunpack.c.l.s4 1934713408
        %v800 = vunpack.c.0.s8 %v799
        %v801 = vlaneseq
        %v802 = vshrl.u32 %v801, 7
        %v803 = vsub.s32 %v800, %v802
        %v804 = vrot.slane %v796, %v803
        %v806 = vunpack.c.l.s4 1934713408
        %v807 = vunpack.c.0.s8 %v806
        %v808 = vlaneseq
        %v809 = vshrl.u32 %v808, 7
        %v810 = vsub.s32 %v807, %v809
        %v811 = vrot.slane %v797, %v810
        %v812 = vcombine.low %v788, %v804
        %v813 = vcombine.high %v788, %v804
        %v814 = vcombine.low %v795, %v811
        %v815 = vcombine.high %v795, %v811
        %v816 = vld [vmem:[#allocation2] sm:$0xff]
        %v817 = vld [vmem:[#allocation2 + $0x8] sm:$0xff]
        %v818 = vld [vmem:[#allocation2 + $0x10] sm:$0xff]
        %v819 = vld [vmem:[#allocation2 + $0x18] sm:$0xff]
        %vm820 = vcmask 64512
        %v822 = vsel %vm820, %v812, 0
        %824 = vmatprep.subr.mxu0 0.0
        %825 = vmatpush1.msra.mxu0 %v816
        %826 = vmatprep.subr.mxu0 0.0
        %827 = vmatpush1.msra.mxu0 0.0
        %828 = vmatprep.subr.mxu0 0.0
        %829 = vmatpush1.msra.mxu0 0.0
        %830 = vmatprep.subr.mxu0 0.0
        %831 = vmatpush1.msra.mxu0 0.0
        %832 = vmatprep.subr.mxu0 0.0
        %833 = vmatpush1.msra.mxu0 0.0
        %834 = vmatprep.subr.mxu0 0.0
        %835 = vmatpush1.msra.mxu0 0.0
        %836 = vmatprep.subr.mxu0 0.0
        %837 = vmatpush1.msra.mxu0 0.0
        %838 = vmatprep.subr.mxu0 0.0
        %839 = vmatpush1.msra.mxu0 0.0
        %840 = vmatprep.subr.mxu0 0.0
        %841 = vmatpush1.msra.mxu0 0.0
        %842 = vmatprep.subr.mxu0 0.0
        %843 = vmatpush1.msra.mxu0 0.0
        %844 = vmatprep.subr.mxu0 0.0
        %845 = vmatpush1.msra.mxu0 0.0
        %846 = vmatprep.subr.mxu0 0.0
        %847 = vmatpush1.msra.mxu0 0.0
        %848 = vmatprep.subr.mxu0 0.0
        %849 = vmatpush1.msra.mxu0 0.0
        %850 = vmatprep.subr.mxu0 0.0
        %851 = vmatpush1.msra.mxu0 0.0
        %852 = vmatprep.subr.mxu0 0.0
        %853 = vmatpush1.msra.mxu0 0.0
        %854 = vmatprep.subr.mxu0 0.0
        %855 = vmatpush1.msra.mxu0 0.0
        %856 = vmatprep.subr.mxu0 0.0
        %857 = vmatpush1.msra.mxu0 0.0
        %858 = vmatprep.subr.mxu0 0.0
        %859 = vmatpush1.msra.mxu0 0.0
        %860 = vmatprep.subr.mxu0 0.0
        %861 = vmatpush1.msra.mxu0 0.0
        %862 = vmatprep.subr.mxu0 0.0
        %863 = vmatpush1.msra.mxu0 0.0
        %864 = vmatprep.subr.mxu0 0.0
        %865 = vmatpush1.msra.mxu0 0.0
        %866 = vmatprep.subr.mxu0 0.0
        %867 = vmatpush1.msra.mxu0 0.0
        %868 = vmatprep.subr.mxu0 0.0
        %869 = vmatpush1.msra.mxu0 0.0
        %870 = vmatprep.subr.mxu0 0.0
        %871 = vmatpush1.msra.mxu0 0.0
        %872 = vmatprep.subr.mxu0 0.0
        %873 = vmatpush1.msra.mxu0 0.0
        %874 = vmatprep.subr.mxu0 0.0
        %875 = vmatpush1.msra.mxu0 0.0
        %876 = vmatprep.subr.mxu0 0.0
        %877 = vmatpush1.msra.mxu0 0.0
        %878 = vmatprep.subr.mxu0 0.0
        %879 = vmatpush1.msra.mxu0 0.0
        %880 = vmatprep.subr.mxu0 0.0
        %881 = vmatpush1.msra.mxu0 0.0
        %882 = vmatprep.subr.mxu0 0.0
        %883 = vmatpush1.msra.mxu0 0.0
        %884 = vmatprep.subr.mxu0 0.0
        %885 = vmatpush1.msra.mxu0 0.0
        %886 = vmatprep.subr.mxu0 0.0
        %887 = vmatpush1.msra.mxu0 0.0
        %888 = vmatprep.mubr.f32.mxu0 0.0
        %889 = vmatmul.mubr.f32.gmra.mrb[0].mxu0 %v822
        %v890 = vpop.f32.mrb[0].mxu0
        %v891 = vadd.f32 0.0, %v890
        %v892 = vpop.f32.mrb[0].mxu0
        %893 = vdwg.mxu0
        %v895 = vsel %vm820, %v813, 0
        %897 = vmatprep.subr.mxu0 0.0
        %898 = vmatpush1.msra.mxu0 %v817
        %899 = vmatprep.subr.mxu0 0.0
        %900 = vmatpush1.msra.mxu0 0.0
        %901 = vmatprep.subr.mxu0 0.0
        %902 = vmatpush1.msra.mxu0 0.0
        %903 = vmatprep.subr.mxu0 0.0
        %904 = vmatpush1.msra.mxu0 0.0
        %905 = vmatprep.subr.mxu0 0.0
        %906 = vmatpush1.msra.mxu0 0.0
        %907 = vmatprep.subr.mxu0 0.0
        %908 = vmatpush1.msra.mxu0 0.0
        %909 = vmatprep.subr.mxu0 0.0
        %910 = vmatpush1.msra.mxu0 0.0
        %911 = vmatprep.subr.mxu0 0.0
        %912 = vmatpush1.msra.mxu0 0.0
        %913 = vmatprep.subr.mxu0 0.0
        %914 = vmatpush1.msra.mxu0 0.0
        %915 = vmatprep.subr.mxu0 0.0
        %916 = vmatpush1.msra.mxu0 0.0
        %917 = vmatprep.subr.mxu0 0.0
        %918 = vmatpush1.msra.mxu0 0.0
        %919 = vmatprep.subr.mxu0 0.0
        %920 = vmatpush1.msra.mxu0 0.0
        %921 = vmatprep.subr.mxu0 0.0
        %922 = vmatpush1.msra.mxu0 0.0
        %923 = vmatprep.subr.mxu0 0.0
        %924 = vmatpush1.msra.mxu0 0.0
        %925 = vmatprep.subr.mxu0 0.0
        %926 = vmatpush1.msra.mxu0 0.0
        %927 = vmatprep.subr.mxu0 0.0
        %928 = vmatpush1.msra.mxu0 0.0
        %929 = vmatprep.subr.mxu0 0.0
        %930 = vmatpush1.msra.mxu0 0.0
        %931 = vmatprep.subr.mxu0 0.0
        %932 = vmatpush1.msra.mxu0 0.0
        %933 = vmatprep.subr.mxu0 0.0
        %934 = vmatpush1.msra.mxu0 0.0
        %935 = vmatprep.subr.mxu0 0.0
        %936 = vmatpush1.msra.mxu0 0.0
        %937 = vmatprep.subr.mxu0 0.0
        %938 = vmatpush1.msra.mxu0 0.0
        %939 = vmatprep.subr.mxu0 0.0
        %940 = vmatpush1.msra.mxu0 0.0
        %941 = vmatprep.subr.mxu0 0.0
        %942 = vmatpush1.msra.mxu0 0.0
        %943 = vmatprep.subr.mxu0 0.0
        %944 = vmatpush1.msra.mxu0 0.0
        %945 = vmatprep.subr.mxu0 0.0
        %946 = vmatpush1.msra.mxu0 0.0
        %947 = vmatprep.subr.mxu0 0.0
        %948 = vmatpush1.msra.mxu0 0.0
        %949 = vmatprep.subr.mxu0 0.0
        %950 = vmatpush1.msra.mxu0 0.0
        %951 = vmatprep.subr.mxu0 0.0
        %952 = vmatpush1.msra.mxu0 0.0
        %953 = vmatprep.subr.mxu0 0.0
        %954 = vmatpush1.msra.mxu0 0.0
        %955 = vmatprep.subr.mxu0 0.0
        %956 = vmatpush1.msra.mxu0 0.0
        %957 = vmatprep.subr.mxu0 0.0
        %958 = vmatpush1.msra.mxu0 0.0
        %959 = vmatprep.subr.mxu0 0.0
        %960 = vmatpush1.msra.mxu0 0.0
        %961 = vmatprep.mubr.f32.mxu0 0.0
        %962 = vmatmul.mubr.f32.gmra.mrb[0].mxu0 %v895
        %v963 = vpop.f32.mrb[0].mxu0
        %v964 = vadd.f32 0.0, %v963
        %v965 = vpop.f32.mrb[0].mxu0
        %966 = vdwg.mxu0
        %v968 = vsel %vm820, %v814, 0
        %970 = vmatprep.subr.mxu0 0.0
        %971 = vmatpush1.msra.mxu0 %v818
        %972 = vmatprep.subr.mxu0 0.0
        %973 = vmatpush1.msra.mxu0 0.0
        %974 = vmatprep.subr.mxu0 0.0
        %975 = vmatpush1.msra.mxu0 0.0
        %976 = vmatprep.subr.mxu0 0.0
        %977 = vmatpush1.msra.mxu0 0.0
        %978 = vmatprep.subr.mxu0 0.0
        %979 = vmatpush1.msra.mxu0 0.0
        %980 = vmatprep.subr.mxu0 0.0
        %981 = vmatpush1.msra.mxu0 0.0
        %982 = vmatprep.subr.mxu0 0.0
        %983 = vmatpush1.msra.mxu0 0.0
        %984 = vmatprep.subr.mxu0 0.0
        %985 = vmatpush1.msra.mxu0 0.0
        %986 = vmatprep.subr.mxu0 0.0
        %987 = vmatpush1.msra.mxu0 0.0
        %988 = vmatprep.subr.mxu0 0.0
        %989 = vmatpush1.msra.mxu0 0.0
        %990 = vmatprep.subr.mxu0 0.0
        %991 = vmatpush1.msra.mxu0 0.0
        %992 = vmatprep.subr.mxu0 0.0
        %993 = vmatpush1.msra.mxu0 0.0
        %994 = vmatprep.subr.mxu0 0.0
        %995 = vmatpush1.msra.mxu0 0.0
        %996 = vmatprep.subr.mxu0 0.0
        %997 = vmatpush1.msra.mxu0 0.0
        %998 = vmatprep.subr.mxu0 0.0
        %999 = vmatpush1.msra.mxu0 0.0
        %1000 = vmatprep.subr.mxu0 0.0
        %1001 = vmatpush1.msra.mxu0 0.0
        %1002 = vmatprep.subr.mxu0 0.0
        %1003 = vmatpush1.msra.mxu0 0.0
        %1004 = vmatprep.subr.mxu0 0.0
        %1005 = vmatpush1.msra.mxu0 0.0
        %1006 = vmatprep.subr.mxu0 0.0
        %1007 = vmatpush1.msra.mxu0 0.0
        %1008 = vmatprep.subr.mxu0 0.0
        %1009 = vmatpush1.msra.mxu0 0.0
        %1010 = vmatprep.subr.mxu0 0.0
        %1011 = vmatpush1.msra.mxu0 0.0
        %1012 = vmatprep.subr.mxu0 0.0
        %1013 = vmatpush1.msra.mxu0 0.0
        %1014 = vmatprep.subr.mxu0 0.0
        %1015 = vmatpush1.msra.mxu0 0.0
        %1016 = vmatprep.subr.mxu0 0.0
        %1017 = vmatpush1.msra.mxu0 0.0
        %1018 = vmatprep.subr.mxu0 0.0
        %1019 = vmatpush1.msra.mxu0 0.0
        %1020 = vmatprep.subr.mxu0 0.0
        %1021 = vmatpush1.msra.mxu0 0.0
        %1022 = vmatprep.subr.mxu0 0.0
        %1023 = vmatpush1.msra.mxu0 0.0
        %1024 = vmatprep.subr.mxu0 0.0
        %1025 = vmatpush1.msra.mxu0 0.0
        %1026 = vmatprep.subr.mxu0 0.0
        %1027 = vmatpush1.msra.mxu0 0.0
        %1028 = vmatprep.subr.mxu0 0.0
        %1029 = vmatpush1.msra.mxu0 0.0
        %1030 = vmatprep.subr.mxu0 0.0
        %1031 = vmatpush1.msra.mxu0 0.0
        %1032 = vmatprep.subr.mxu0 0.0
        %1033 = vmatpush1.msra.mxu0 0.0
        %1034 = vmatprep.mubr.f32.mxu0 0.0
        %1035 = vmatmul.mubr.f32.gmra.mrb[0].mxu0 %v968
        %v1036 = vpop.f32.mrb[0].mxu0
        %v1037 = vadd.f32 0.0, %v1036
        %v1038 = vpop.f32.mrb[0].mxu0
        %1039 = vdwg.mxu0
        %v1041 = vsel %vm820, %v815, 0
        %1043 = vmatprep.subr.mxu0 0.0
        %1044 = vmatpush1.msra.mxu0 %v819
        %1045 = vmatprep.subr.mxu0 0.0
        %1046 = vmatpush1.msra.mxu0 0.0
        %1047 = vmatprep.subr.mxu0 0.0
        %1048 = vmatpush1.msra.mxu0 0.0
        %1049 = vmatprep.subr.mxu0 0.0
        %1050 = vmatpush1.msra.mxu0 0.0
        %1051 = vmatprep.subr.mxu0 0.0
        %1052 = vmatpush1.msra.mxu0 0.0
        %1053 = vmatprep.subr.mxu0 0.0
        %1054 = vmatpush1.msra.mxu0 0.0
        %1055 = vmatprep.subr.mxu0 0.0
        %1056 = vmatpush1.msra.mxu0 0.0
        %1057 = vmatprep.subr.mxu0 0.0
        %1058 = vmatpush1.msra.mxu0 0.0
        %1059 = vmatprep.subr.mxu0 0.0
        %1060 = vmatpush1.msra.mxu0 0.0
        %1061 = vmatprep.subr.mxu0 0.0
        %1062 = vmatpush1.msra.mxu0 0.0
        %1063 = vmatprep.subr.mxu0 0.0
        %1064 = vmatpush1.msra.mxu0 0.0
        %1065 = vmatprep.subr.mxu0 0.0
        %1066 = vmatpush1.msra.mxu0 0.0
        %1067 = vmatprep.subr.mxu0 0.0
        %1068 = vmatpush1.msra.mxu0 0.0
        %1069 = vmatprep.subr.mxu0 0.0
        %1070 = vmatpush1.msra.mxu0 0.0
        %1071 = vmatprep.subr.mxu0 0.0
        %1072 = vmatpush1.msra.mxu0 0.0
        %1073 = vmatprep.subr.mxu0 0.0
        %1074 = vmatpush1.msra.mxu0 0.0
        %1075 = vmatprep.subr.mxu0 0.0
        %1076 = vmatpush1.msra.mxu0 0.0
        %1077 = vmatprep.subr.mxu0 0.0
        %1078 = vmatpush1.msra.mxu0 0.0
        %1079 = vmatprep.subr.mxu0 0.0
        %1080 = vmatpush1.msra.mxu0 0.0
        %1081 = vmatprep.subr.mxu0 0.0
        %1082 = vmatpush1.msra.mxu0 0.0
        %1083 = vmatprep.subr.mxu0 0.0
        %1084 = vmatpush1.msra.mxu0 0.0
        %1085 = vmatprep.subr.mxu0 0.0
        %1086 = vmatpush1.msra.mxu0 0.0
        %1087 = vmatprep.subr.mxu0 0.0
        %1088 = vmatpush1.msra.mxu0 0.0
        %1089 = vmatprep.subr.mxu0 0.0
        %1090 = vmatpush1.msra.mxu0 0.0
        %1091 = vmatprep.subr.mxu0 0.0
        %1092 = vmatpush1.msra.mxu0 0.0
        %1093 = vmatprep.subr.mxu0 0.0
        %1094 = vmatpush1.msra.mxu0 0.0
        %1095 = vmatprep.subr.mxu0 0.0
        %1096 = vmatpush1.msra.mxu0 0.0
        %1097 = vmatprep.subr.mxu0 0.0
        %1098 = vmatpush1.msra.mxu0 0.0
        %1099 = vmatprep.subr.mxu0 0.0
        %1100 = vmatpush1.msra.mxu0 0.0
        %1101 = vmatprep.subr.mxu0 0.0
        %1102 = vmatpush1.msra.mxu0 0.0
        %1103 = vmatprep.subr.mxu0 0.0
        %1104 = vmatpush1.msra.mxu0 0.0
        %1105 = vmatprep.subr.mxu0 0.0
        %1106 = vmatpush1.msra.mxu0 0.0
        %1107 = vmatprep.mubr.f32.mxu0 0.0
        %1108 = vmatmul.mubr.f32.gmra.mrb[0].mxu0 %v1041
        %v1109 = vpop.f32.mrb[0].mxu0
        %v1110 = vadd.f32 0.0, %v1109
        %v1111 = vpop.f32.mrb[0].mxu0
        %1112 = vdwg.mxu0
        %v1113 = vsel %vm820, %v891, -inf
        %1114 = vmax.xlane.f32.xlu0 %v1113
        %v1115 = vpop.xlane.xlu0 %1114
        %v1116 = vsel %vm820, %v964, -inf
        %1117 = vmax.xlane.f32.xlu0 %v1116
        %v1118 = vpop.xlane.xlu0 %1117
        %v1119 = vsel %vm820, %v1037, -inf
        %1120 = vmax.xlane.f32.xlu0 %v1119
        %v1121 = vpop.xlane.xlu0 %1120
        %v1122 = vsel %vm820, %v1110, -inf
        %1123 = vmax.xlane.f32.xlu0 %v1122
        %v1124 = vpop.xlane.xlu0 %1123
        %v1125 = vsub.f32 %v891, %v1115
        %v1126 = vsub.f32 %v964, %v1118
        %v1127 = vsub.f32 %v1037, %v1121
        %v1128 = vsub.f32 %v1110, %v1124
        %v1129 = vmul.f32 %v1125, 1.442695
        %v1130 = vpow.pop %v1129
        %v1131 = vmul.f32 %v1126, 1.442695
        %v1132 = vpow.pop %v1131
        %v1133 = vmul.f32 %v1127, 1.442695
        %v1134 = vpow.pop %v1133
        %v1135 = vmul.f32 %v1128, 1.442695
        %v1136 = vpow.pop %v1135
        %v1137 = vsel %vm820, %v1130, 0.0
        %1138 = vadd.xlane.f32.xlu0 %v1137
        %v1139 = vpop.xlane.xlu0 %1138
        %v1140 = vsel %vm820, %v1132, 0.0
        %1141 = vadd.xlane.f32.xlu0 %v1140
        %v1142 = vpop.xlane.xlu0 %1141
        %v1143 = vsel %vm820, %v1134, 0.0
        %1144 = vadd.xlane.f32.xlu0 %v1143
        %v1145 = vpop.xlane.xlu0 %1144
        %v1146 = vsel %vm820, %v1136, 0.0
        %1147 = vadd.xlane.f32.xlu0 %v1146
        %v1148 = vpop.xlane.xlu0 %1147
        %v1149 = vld [vmem:[#allocation3] sm:$0xff]
        %v1150 = vld [vmem:[#allocation3 + $0x8] sm:$0xff]
        %v1151 = vld [vmem:[#allocation3 + $0x10] sm:$0xff]
        %v1152 = vld [vmem:[#allocation3 + $0x18] sm:$0xff]
        %v1154 = vsel %vm820, %v1130, 0
        %1156 = vmatprep.subr.mxu0 0.0
        %1157 = vmatpush1.msra.mxu0 %v1149
        %1158 = vmatprep.subr.mxu0 0.0
        %1159 = vmatpush1.msra.mxu0 0.0
        %1160 = vmatprep.subr.mxu0 0.0
        %1161 = vmatpush1.msra.mxu0 0.0
        %1162 = vmatprep.subr.mxu0 0.0
        %1163 = vmatpush1.msra.mxu0 0.0
        %1164 = vmatprep.subr.mxu0 0.0
        %1165 = vmatpush1.msra.mxu0 0.0
        %1166 = vmatprep.subr.mxu0 0.0
        %1167 = vmatpush1.msra.mxu0 0.0
        %1168 = vmatprep.subr.mxu0 0.0
        %1169 = vmatpush1.msra.mxu0 0.0
        %1170 = vmatprep.subr.mxu0 0.0
        %1171 = vmatpush1.msra.mxu0 0.0
        %1172 = vmatprep.subr.mxu0 0.0
        %1173 = vmatpush1.msra.mxu0 0.0
        %1174 = vmatprep.subr.mxu0 0.0
        %1175 = vmatpush1.msra.mxu0 0.0
        %1176 = vmatprep.subr.mxu0 0.0
        %1177 = vmatpush1.msra.mxu0 0.0
        %1178 = vmatprep.subr.mxu0 0.0
        %1179 = vmatpush1.msra.mxu0 0.0
        %1180 = vmatprep.subr.mxu0 0.0
        %1181 = vmatpush1.msra.mxu0 0.0
        %1182 = vmatprep.subr.mxu0 0.0
        %1183 = vmatpush1.msra.mxu0 0.0
        %1184 = vmatprep.subr.mxu0 0.0
        %1185 = vmatpush1.msra.mxu0 0.0
        %1186 = vmatprep.subr.mxu0 0.0
        %1187 = vmatpush1.msra.mxu0 0.0
        %1188 = vmatprep.subr.mxu0 0.0
        %1189 = vmatpush1.msra.mxu0 0.0
        %1190 = vmatprep.subr.mxu0 0.0
        %1191 = vmatpush1.msra.mxu0 0.0
        %1192 = vmatprep.subr.mxu0 0.0
        %1193 = vmatpush1.msra.mxu0 0.0
        %1194 = vmatprep.subr.mxu0 0.0
        %1195 = vmatpush1.msra.mxu0 0.0
        %1196 = vmatprep.subr.mxu0 0.0
        %1197 = vmatpush1.msra.mxu0 0.0
        %1198 = vmatprep.subr.mxu0 0.0
        %1199 = vmatpush1.msra.mxu0 0.0
        %1200 = vmatprep.subr.mxu0 0.0
        %1201 = vmatpush1.msra.mxu0 0.0
        %1202 = vmatprep.subr.mxu0 0.0
        %1203 = vmatpush1.msra.mxu0 0.0
        %1204 = vmatprep.subr.mxu0 0.0
        %1205 = vmatpush1.msra.mxu0 0.0
        %1206 = vmatprep.subr.mxu0 0.0
        %1207 = vmatpush1.msra.mxu0 0.0
        %1208 = vmatprep.subr.mxu0 0.0
        %1209 = vmatpush1.msra.mxu0 0.0
        %1210 = vmatprep.subr.mxu0 0.0
        %1211 = vmatpush1.msra.mxu0 0.0
        %1212 = vmatprep.subr.mxu0 0.0
        %1213 = vmatpush1.msra.mxu0 0.0
        %1214 = vmatprep.subr.mxu0 0.0
        %1215 = vmatpush1.msra.mxu0 0.0
        %1216 = vmatprep.subr.mxu0 0.0
        %1217 = vmatpush1.msra.mxu0 0.0
        %1218 = vmatprep.subr.mxu0 0.0
        %1219 = vmatpush1.msra.mxu0 0.0
        %1220 = vmatprep.mubr.f32.mxu0 0.0
        %1221 = vmatmul.mubr.f32.gmra.mrb[0].mxu0 %v1154
        %v1222 = vpop.f32.mrb[0].mxu0
        %v1223 = vadd.f32 0.0, %v1222
        %v1224 = vpop.f32.mrb[0].mxu0
        %1225 = vdwg.mxu0
        %v1227 = vsel %vm820, %v1132, 0
        %1229 = vmatprep.subr.mxu0 0.0
        %1230 = vmatpush1.msra.mxu0 %v1150
        %1231 = vmatprep.subr.mxu0 0.0
        %1232 = vmatpush1.msra.mxu0 0.0
        %1233 = vmatprep.subr.mxu0 0.0
        %1234 = vmatpush1.msra.mxu0 0.0
        %1235 = vmatprep.subr.mxu0 0.0
        %1236 = vmatpush1.msra.mxu0 0.0
        %1237 = vmatprep.subr.mxu0 0.0
        %1238 = vmatpush1.msra.mxu0 0.0
        %1239 = vmatprep.subr.mxu0 0.0
        %1240 = vmatpush1.msra.mxu0 0.0
        %1241 = vmatprep.subr.mxu0 0.0
        %1242 = vmatpush1.msra.mxu0 0.0
        %1243 = vmatprep.subr.mxu0 0.0
        %1244 = vmatpush1.msra.mxu0 0.0
        %1245 = vmatprep.subr.mxu0 0.0
        %1246 = vmatpush1.msra.mxu0 0.0
        %1247 = vmatprep.subr.mxu0 0.0
        %1248 = vmatpush1.msra.mxu0 0.0
        %1249 = vmatprep.subr.mxu0 0.0
        %1250 = vmatpush1.msra.mxu0 0.0
        %1251 = vmatprep.subr.mxu0 0.0
        %1252 = vmatpush1.msra.mxu0 0.0
        %1253 = vmatprep.subr.mxu0 0.0
        %1254 = vmatpush1.msra.mxu0 0.0
        %1255 = vmatprep.subr.mxu0 0.0
        %1256 = vmatpush1.msra.mxu0 0.0
        %1257 = vmatprep.subr.mxu0 0.0
        %1258 = vmatpush1.msra.mxu0 0.0
        %1259 = vmatprep.subr.mxu0 0.0
        %1260 = vmatpush1.msra.mxu0 0.0
        %1261 = vmatprep.subr.mxu0 0.0
        %1262 = vmatpush1.msra.mxu0 0.0
        %1263 = vmatprep.subr.mxu0 0.0
        %1264 = vmatpush1.msra.mxu0 0.0
        %1265 = vmatprep.subr.mxu0 0.0
        %1266 = vmatpush1.msra.mxu0 0.0
        %1267 = vmatprep.subr.mxu0 0.0
        %1268 = vmatpush1.msra.mxu0 0.0
        %1269 = vmatprep.subr.mxu0 0.0
        %1270 = vmatpush1.msra.mxu0 0.0
        %1271 = vmatprep.subr.mxu0 0.0
        %1272 = vmatpush1.msra.mxu0 0.0
        %1273 = vmatprep.subr.mxu0 0.0
        %1274 = vmatpush1.msra.mxu0 0.0
        %1275 = vmatprep.subr.mxu0 0.0
        %1276 = vmatpush1.msra.mxu0 0.0
        %1277 = vmatprep.subr.mxu0 0.0
        %1278 = vmatpush1.msra.mxu0 0.0
        %1279 = vmatprep.subr.mxu0 0.0
        %1280 = vmatpush1.msra.mxu0 0.0
        %1281 = vmatprep.subr.mxu0 0.0
        %1282 = vmatpush1.msra.mxu0 0.0
        %1283 = vmatprep.subr.mxu0 0.0
        %1284 = vmatpush1.msra.mxu0 0.0
        %1285 = vmatprep.subr.mxu0 0.0
        %1286 = vmatpush1.msra.mxu0 0.0
        %1287 = vmatprep.subr.mxu0 0.0
        %1288 = vmatpush1.msra.mxu0 0.0
        %1289 = vmatprep.subr.mxu0 0.0
        %1290 = vmatpush1.msra.mxu0 0.0
        %1291 = vmatprep.subr.mxu0 0.0
        %1292 = vmatpush1.msra.mxu0 0.0
        %1293 = vmatprep.mubr.f32.mxu0 0.0
        %1294 = vmatmul.mubr.f32.gmra.mrb[0].mxu0 %v1227
        %v1295 = vpop.f32.mrb[0].mxu0
        %v1296 = vadd.f32 0.0, %v1295
        %v1297 = vpop.f32.mrb[0].mxu0
        %1298 = vdwg.mxu0
        %v1300 = vsel %vm820, %v1134, 0
        %1302 = vmatprep.subr.mxu0 0.0
        %1303 = vmatpush1.msra.mxu0 %v1151
        %1304 = vmatprep.subr.mxu0 0.0
        %1305 = vmatpush1.msra.mxu0 0.0
        %1306 = vmatprep.subr.mxu0 0.0
        %1307 = vmatpush1.msra.mxu0 0.0
        %1308 = vmatprep.subr.mxu0 0.0
        %1309 = vmatpush1.msra.mxu0 0.0
        %1310 = vmatprep.subr.mxu0 0.0
        %1311 = vmatpush1.msra.mxu0 0.0
        %1312 = vmatprep.subr.mxu0 0.0
        %1313 = vmatpush1.msra.mxu0 0.0
        %1314 = vmatprep.subr.mxu0 0.0
        %1315 = vmatpush1.msra.mxu0 0.0
        %1316 = vmatprep.subr.mxu0 0.0
        %1317 = vmatpush1.msra.mxu0 0.0
        %1318 = vmatprep.subr.mxu0 0.0
        %1319 = vmatpush1.msra.mxu0 0.0
        %1320 = vmatprep.subr.mxu0 0.0
        %1321 = vmatpush1.msra.mxu0 0.0
        %1322 = vmatprep.subr.mxu0 0.0
        %1323 = vmatpush1.msra.mxu0 0.0
        %1324 = vmatprep.subr.mxu0 0.0
        %1325 = vmatpush1.msra.mxu0 0.0
        %1326 = vmatprep.subr.mxu0 0.0
        %1327 = vmatpush1.msra.mxu0 0.0
        %1328 = vmatprep.subr.mxu0 0.0
        %1329 = vmatpush1.msra.mxu0 0.0
        %1330 = vmatprep.subr.mxu0 0.0
        %1331 = vmatpush1.msra.mxu0 0.0
        %1332 = vmatprep.subr.mxu0 0.0
        %1333 = vmatpush1.msra.mxu0 0.0
        %1334 = vmatprep.subr.mxu0 0.0
        %1335 = vmatpush1.msra.mxu0 0.0
        %1336 = vmatprep.subr.mxu0 0.0
        %1337 = vmatpush1.msra.mxu0 0.0
        %1338 = vmatprep.subr.mxu0 0.0
        %1339 = vmatpush1.msra.mxu0 0.0
        %1340 = vmatprep.subr.mxu0 0.0
        %1341 = vmatpush1.msra.mxu0 0.0
        %1342 = vmatprep.subr.mxu0 0.0
        %1343 = vmatpush1.msra.mxu0 0.0
        %1344 = vmatprep.subr.mxu0 0.0
        %1345 = vmatpush1.msra.mxu0 0.0
        %1346 = vmatprep.subr.mxu0 0.0
        %1347 = vmatpush1.msra.mxu0 0.0
        %1348 = vmatprep.subr.mxu0 0.0
        %1349 = vmatpush1.msra.mxu0 0.0
        %1350 = vmatprep.subr.mxu0 0.0
        %1351 = vmatpush1.msra.mxu0 0.0
        %1352 = vmatprep.subr.mxu0 0.0
        %1353 = vmatpush1.msra.mxu0 0.0
        %1354 = vmatprep.subr.mxu0 0.0
        %1355 = vmatpush1.msra.mxu0 0.0
        %1356 = vmatprep.subr.mxu0 0.0
        %1357 = vmatpush1.msra.mxu0 0.0
        %1358 = vmatprep.subr.mxu0 0.0
        %1359 = vmatpush1.msra.mxu0 0.0
        %1360 = vmatprep.subr.mxu0 0.0
        %1361 = vmatpush1.msra.mxu0 0.0
        %1362 = vmatprep.subr.mxu0 0.0
        %1363 = vmatpush1.msra.mxu0 0.0
        %1364 = vmatprep.subr.mxu0 0.0
        %1365 = vmatpush1.msra.mxu0 0.0
        %1366 = vmatprep.mubr.f32.mxu0 0.0
        %1367 = vmatmul.mubr.f32.gmra.mrb[0].mxu0 %v1300
        %v1368 = vpop.f32.mrb[0].mxu0
        %v1369 = vadd.f32 0.0, %v1368
        %v1370 = vpop.f32.mrb[0].mxu0
        %1371 = vdwg.mxu0
        %v1373 = vsel %vm820, %v1136, 0
        %1375 = vmatprep.subr.mxu0 0.0
        %1376 = vmatpush1.msra.mxu0 %v1152
        %1377 = vmatprep.subr.mxu0 0.0
        %1378 = vmatpush1.msra.mxu0 0.0
        %1379 = vmatprep.subr.mxu0 0.0
        %1380 = vmatpush1.msra.mxu0 0.0
        %1381 = vmatprep.subr.mxu0 0.0
        %1382 = vmatpush1.msra.mxu0 0.0
        %1383 = vmatprep.subr.mxu0 0.0
        %1384 = vmatpush1.msra.mxu0 0.0
        %1385 = vmatprep.subr.mxu0 0.0
        %1386 = vmatpush1.msra.mxu0 0.0
        %1387 = vmatprep.subr.mxu0 0.0
        %1388 = vmatpush1.msra.mxu0 0.0
        %1389 = vmatprep.subr.mxu0 0.0
        %1390 = vmatpush1.msra.mxu0 0.0
        %1391 = vmatprep.subr.mxu0 0.0
        %1392 = vmatpush1.msra.mxu0 0.0
        %1393 = vmatprep.subr.mxu0 0.0
        %1394 = vmatpush1.msra.mxu0 0.0
        %1395 = vmatprep.subr.mxu0 0.0
        %1396 = vmatpush1.msra.mxu0 0.0
        %1397 = vmatprep.subr.mxu0 0.0
        %1398 = vmatpush1.msra.mxu0 0.0
        %1399 = vmatprep.subr.mxu0 0.0
        %1400 = vmatpush1.msra.mxu0 0.0
        %1401 = vmatprep.subr.mxu0 0.0
        %1402 = vmatpush1.msra.mxu0 0.0
        %1403 = vmatprep.subr.mxu0 0.0
        %1404 = vmatpush1.msra.mxu0 0.0
        %1405 = vmatprep.subr.mxu0 0.0
        %1406 = vmatpush1.msra.mxu0 0.0
        %1407 = vmatprep.subr.mxu0 0.0
        %1408 = vmatpush1.msra.mxu0 0.0
        %1409 = vmatprep.subr.mxu0 0.0
        %1410 = vmatpush1.msra.mxu0 0.0
        %1411 = vmatprep.subr.mxu0 0.0
        %1412 = vmatpush1.msra.mxu0 0.0
        %1413 = vmatprep.subr.mxu0 0.0
        %1414 = vmatpush1.msra.mxu0 0.0
        %1415 = vmatprep.subr.mxu0 0.0
        %1416 = vmatpush1.msra.mxu0 0.0
        %1417 = vmatprep.subr.mxu0 0.0
        %1418 = vmatpush1.msra.mxu0 0.0
        %1419 = vmatprep.subr.mxu0 0.0
        %1420 = vmatpush1.msra.mxu0 0.0
        %1421 = vmatprep.subr.mxu0 0.0
        %1422 = vmatpush1.msra.mxu0 0.0
        %1423 = vmatprep.subr.mxu0 0.0
        %1424 = vmatpush1.msra.mxu0 0.0
        %1425 = vmatprep.subr.mxu0 0.0
        %1426 = vmatpush1.msra.mxu0 0.0
        %1427 = vmatprep.subr.mxu0 0.0
        %1428 = vmatpush1.msra.mxu0 0.0
        %1429 = vmatprep.subr.mxu0 0.0
        %1430 = vmatpush1.msra.mxu0 0.0
        %1431 = vmatprep.subr.mxu0 0.0
        %1432 = vmatpush1.msra.mxu0 0.0
        %1433 = vmatprep.subr.mxu0 0.0
        %1434 = vmatpush1.msra.mxu0 0.0
        %1435 = vmatprep.subr.mxu0 0.0
        %1436 = vmatpush1.msra.mxu0 0.0
        %1437 = vmatprep.subr.mxu0 0.0
        %1438 = vmatpush1.msra.mxu0 0.0
        %1439 = vmatprep.mubr.f32.mxu0 0.0
        %1440 = vmatmul.mubr.f32.gmra.mrb[0].mxu0 %v1373
        %v1441 = vpop.f32.mrb[0].mxu0
        %v1442 = vadd.f32 0.0, %v1441
        %v1443 = vpop.f32.mrb[0].mxu0
        %1444 = vdwg.mxu0
        %v1445 = vrcp.pop %v1139
        %v1446 = vrcp.pop %v1142
        %v1447 = vrcp.pop %v1145
        %v1448 = vrcp.pop %v1148
        %v1449 = vmul.f32 %v1223, %v1445
        %1450 = vst.msk [vmem:[#allocation4] sm:$0xff] %vm820, %v1449
        %v1451 = vmul.f32 %v1296, %v1446
        %1453 = vrot.lane.b32.xlu0 %v1451, 8
        %v1454 = vpop.permute.xlu0 %1453
        %vm1456 = vcmask 130112
        %1457 = vst.msk [vmem:[#allocation4] sm:$0xff] %vm1456, %v1454
        %v1458 = vmul.f32 %v1369, %v1447
        %1460 = vrot.lane.b32.xlu0 %v1458, 16
        %v1461 = vpop.permute.xlu0 %1460
        %vm1463 = vcmask 195712
        %1464 = vst.msk [vmem:[#allocation4] sm:$0xff] %vm1463, %v1461
        %v1465 = vmul.f32 %v1442, %v1448
        %1467 = vrot.lane.b32.xlu0 %v1465, 24
        %v1468 = vpop.permute.xlu0 %1467
        %vm1470 = vcmask 261312
        %1471 = vst.msk [vmem:[#allocation4] sm:$0xff] %vm1470, %v1468
        %v1472 = vld [vmem:[#allocation4] sm:$0xff]
        %v1473 = vld [vmem:[#allocation11] sm:$0xff]
        %v1474 = vld [vmem:[#allocation11 + $0x8] sm:$0xff]
        %v1475 = vld [vmem:[#allocation11 + $0x10] sm:$0xff]
        %v1476 = vld [vmem:[#allocation11 + $0x18] sm:$0xff]
        %v1477 = vld [vmem:[#allocation13] sm:$0x1]
        %v1479 = vlaneseq
        %v1480 = vshrl.u32 %v1479, 7
        %v1481 = vsub.s32 0, %v1480
        %v1482 = vrot.slane %v1477, %v1481
        %v1485 = vsel %vm596, %v1472, 0
        %1487 = vmatprep.subr.mxu0 0.0
        %1488 = vmatpush1.msra.mxu0 %v1473
        %1489 = vmatprep.subr.mxu0 0.0
        %1490 = vmatpush1.msra.mxu0 %v1474
        %1491 = vmatprep.subr.mxu0 0.0
        %1492 = vmatpush1.msra.mxu0 %v1475
        %1493 = vmatprep.subr.mxu0 0.0
        %1494 = vmatpush1.msra.mxu0 %v1476
        %1495 = vmatprep.subr.mxu0 0.0
        %1496 = vmatpush1.msra.mxu0 0.0
        %1497 = vmatprep.subr.mxu0 0.0
        %1498 = vmatpush1.msra.mxu0 0.0
        %1499 = vmatprep.subr.mxu0 0.0
        %1500 = vmatpush1.msra.mxu0 0.0
        %1501 = vmatprep.subr.mxu0 0.0
        %1502 = vmatpush1.msra.mxu0 0.0
        %1503 = vmatprep.subr.mxu0 0.0
        %1504 = vmatpush1.msra.mxu0 0.0
        %1505 = vmatprep.subr.mxu0 0.0
        %1506 = vmatpush1.msra.mxu0 0.0
        %1507 = vmatprep.subr.mxu0 0.0
        %1508 = vmatpush1.msra.mxu0 0.0
        %1509 = vmatprep.subr.mxu0 0.0
        %1510 = vmatpush1.msra.mxu0 0.0
        %1511 = vmatprep.subr.mxu0 0.0
        %1512 = vmatpush1.msra.mxu0 0.0
        %1513 = vmatprep.subr.mxu0 0.0
        %1514 = vmatpush1.msra.mxu0 0.0
        %1515 = vmatprep.subr.mxu0 0.0
        %1516 = vmatpush1.msra.mxu0 0.0
        %1517 = vmatprep.subr.mxu0 0.0
        %1518 = vmatpush1.msra.mxu0 0.0
        %1519 = vmatprep.subr.mxu0 0.0
        %1520 = vmatpush1.msra.mxu0 0.0
        %1521 = vmatprep.subr.mxu0 0.0
        %1522 = vmatpush1.msra.mxu0 0.0
        %1523 = vmatprep.subr.mxu0 0.0
        %1524 = vmatpush1.msra.mxu0 0.0
        %1525 = vmatprep.subr.mxu0 0.0
        %1526 = vmatpush1.msra.mxu0 0.0
        %1527 = vmatprep.subr.mxu0 0.0
        %1528 = vmatpush1.msra.mxu0 0.0
        %1529 = vmatprep.subr.mxu0 0.0
        %1530 = vmatpush1.msra.mxu0 0.0
        %1531 = vmatprep.subr.mxu0 0.0
        %1532 = vmatpush1.msra.mxu0 0.0
        %1533 = vmatprep.subr.mxu0 0.0
        %1534 = vmatpush1.msra.mxu0 0.0
        %1535 = vmatprep.subr.mxu0 0.0
        %1536 = vmatpush1.msra.mxu0 0.0
        %1537 = vmatprep.subr.mxu0 0.0
        %1538 = vmatpush1.msra.mxu0 0.0
        %1539 = vmatprep.subr.mxu0 0.0
        %1540 = vmatpush1.msra.mxu0 0.0
        %1541 = vmatprep.subr.mxu0 0.0
        %1542 = vmatpush1.msra.mxu0 0.0
        %1543 = vmatprep.subr.mxu0 0.0
        %1544 = vmatpush1.msra.mxu0 0.0
        %1545 = vmatprep.subr.mxu0 0.0
        %1546 = vmatpush1.msra.mxu0 0.0
        %1547 = vmatprep.subr.mxu0 0.0
        %1548 = vmatpush1.msra.mxu0 0.0
        %1549 = vmatprep.subr.mxu0 0.0
        %1550 = vmatpush1.msra.mxu0 0.0
        %1551 = vmatprep.mubr.f32.mxu0 0.0
        %1552 = vmatmul.mubr.f32.gmra.mrb[0].mxu0 %v1485
        %v1553 = vpop.f32.mrb[0].mxu0
        %v1554 = vadd.f32 %v1482, %v1553
        %v1555 = vpop.f32.mrb[0].mxu0
        %1556 = vdwg.mxu0
        %1557 = vst.msk [vmem:[%s309] sm:$0xff] %vm596, %v1554
        %s1558 = sand.u32 %s156, 1
        %s1559 = scalar_lea.sflag [#allocation7], %s1558
        %s1560 = sand.u32 %s156, 1
        %s1561 = smul.addr %s1560, 8
        %s1562 = scalar_lea.vmem [#allocation14], %s1561
        // Predicated region
        $region65: #{tpu_custom_call.1} parent=39 // pred_check
          %p1563 = pneg %p166
        $region66: #{tpu_custom_call.1} parent=39 // pred_check_branch
          %1565 = sbr.rel (%p1563) target = $region68
        $region67: #{tpu_custom_call.1} parent=39 // pred_region
          %s1567 = ssub.s32 128, 128
          %1568 = vsyncadd %s1559, %s1567
          %s1569 = sadd.s32 %s29, %s28
          %s1570 = smul.addr %s1569, 128
          %s1571 = scalar_lea.hbm %s5, %s1570
          %s1573 = sshll.u32 %s1562, 4
          %s1574 = int_to_ptr.vmem [resolvable:$true] %s1573
          %1576 = dma.vmem_to_hbm [thread:$0]  %s1574, 128, %s1571, %s1559
        $region68: #{tpu_custom_call.1} parent=39 // pred_fallthru
          _
      $region40: #{tpu_custom_call.1} parent=5 // pred_fallthru
        _
      %p1577 = scmp.le.s32.totalorder 2, %s19
      // Predicated region
      $region69: #{tpu_custom_call.1} parent=5 // pred_check
        %p1578 = pneg %p1577
      $region70: #{tpu_custom_call.1} parent=5 // pred_check_branch
        %1580 = sbr.rel (%p1578) target = $region72
      $region71: #{tpu_custom_call.1} parent=5 // pred_region
        %s1581 = ssub.s32 %s19, 2
        // Predicated region
        $region73: #{tpu_custom_call.1} parent=71 // pred_check
          %p1582 = pneg %p172
        $region74: #{tpu_custom_call.1} parent=71 // pred_check_branch
          %1584 = sbr.rel (%p1582) target = $region76
        $region75: #{tpu_custom_call.1} parent=71 // pred_region
          %s1585 = sand.u32 %s157, 1
          %s1586 = scalar_lea.sflag [#allocation7], %s1585
          %s1587 = sand.u32 %s157, 1
          %s1588 = smul.addr %s1587, 8
          %s1589 = scalar_lea.vmem [#allocation14], %s1588
          %1590 = dma.done %s1586, 128
        $region76: #{tpu_custom_call.1} parent=71 // pred_fallthru
          _
      $region72: #{tpu_custom_call.1} parent=5 // pred_fallthru
        _
    $region6: #{tpu_custom_call.1} parent=1 // loop_footer
      %s23 = sadd.s32 1, %s19
    $region7: #{tpu_custom_call.1} parent=1 // loop_footer_branch
      %18 = sbr.rel target = $region3
    $region8: #{tpu_custom_call.1} parent=1 // loop_exit
      _
    %1591 = vsyncpa [#allocation6], 1
    %s1592 = scalar_lea.sflag [#allocation6], 1
    %1593 = vsyncpa %s1592, 1
    %1594 = vsyncpa [#allocation9], 1
    %1595 = vsyncpa [#allocation12], 1
    %1596 = vsyncpa [#allocation7], 1
    %s1597 = scalar_lea.sflag [#allocation7], 1
    %1598 = vsyncpa %s1597, 1

</llo_original>
